<compile_context>
chip_gen: v5e
topology: v5e:2x2
jax: 0.10.0
libtpu: 0.0.40
codegen_flags: <defaults>
</compile_context>

<pallas_src>
import jax
import jax.numpy as jnp
from jax import lax
from jax.experimental import pallas as pl
from jax.experimental.pallas import tpu as pltpu

BN_EPS = 1e-5


# ----------------------------------------------------------------------------
# Generation-aware sizing helpers
# ----------------------------------------------------------------------------
def _vmem_budget_bytes():
    try:
        cap = pltpu.get_tpu_info().vmem_capacity_bytes
    except Exception:
        cap = 64 * 1024 * 1024           # conservative default: v7x physical VMEM
    return max(cap - 28 * 1024 * 1024, 16 * 1024 * 1024)


def _divisors_desc(n):
    return [d for d in range(n, 0, -1) if n % d == 0]


def _pick_th(n, h, w, cin, nop, budget):
    """Largest original-resolution row-tile height whose working set fits VMEM."""
    k9 = 9 * cin
    max_th = h if n >= 2 else max(h // 2, 1)     # keep >=2 grid steps for megacore
    for th in _divisors_desc(h):
        if th > max_th:
            continue
        m = th * w
        est = ((th + 2) * (w + 2) * cin * 2 * 2   # bf16 halo tile, double-buffered
               + k9 * nop * 2 * 2                 # bf16 folded weights
               + m * nop * 2 * 2                  # bf16 y tile, double-buffered
               + 2 * nop * 4 * 2                  # f32 stats tile
               + m * k9 * 2 * 2                   # im2col LHS (+ relayout slack)
               + m * nop * 4                      # f32 accumulator
               + m * cin * 2 * 9)                 # sliced tap copies
        if est <= budget and m <= 8192:
            return th
    return 1


def _pick_rows(m_total, nop, budget):
    """Largest divisor of m_total (multiple of 8) whose pass-2 tile fits VMEM."""
    cap = max(budget // (nop * (2 + 4) * 2), 8)   # bf16 in + f32 out, double-buffered
    cap = min(cap, 8192, m_total)
    for d in range(cap, 0, -1):
        if m_total % d == 0 and (d % 8 == 0 or d == m_total):
            return d
    return m_total


# ----------------------------------------------------------------------------
# Subpixel weight folding: Upsample(2x nearest) o Conv3x3(pad=1) on the original
# grid. Output pixel (2i+pr, 2j+pc) only ever reads original pixels at offsets
# {-1,0,+1}^2 around (i, j); the tap->offset mapping depends on the parity.
# ----------------------------------------------------------------------------
_PARITY_SELECT = jnp.array(
    [[[1, 0, 0], [0, 1, 0], [0, 1, 0]],    # parity 0: [tap, offset_idx]
     [[0, 1, 0], [0, 1, 0], [0, 0, 1]]],   # parity 1
    dtype=jnp.float32)


def _fold_subpixel_weights(conv_w):
    """(cout, cin, 3, 3) -> (9*cin, 4*cout).

    K ordered (row_off, col_off, cin); N ordered (row_parity, col_parity, cout).
    """
    cout, cin = conv_w.shape[0], conv_w.shape[1]
    w = conv_w.astype(jnp.float32)
    r = _PARITY_SELECT
    w_eff = jnp.einsum("pya,qxb,oiyx->abipqo", r, r, w)
    return w_eff.reshape(9 * cin, 4 * cout)


# ----------------------------------------------------------------------------
# Pass 1: folded upsample+conv as ONE GEMM per tile + BN partial statistics
# ----------------------------------------------------------------------------
def _conv_stats_kernel(x_ref, w_ref, y_ref, s_ref):
    # x_ref : (th+2, w+2, cin)  bf16 original-res rows (1-px zero pad / halo)
    # w_ref : (9*cin, NOP)      bf16 folded subpixel weights
    # y_ref : (th*w, NOP)       bf16 conv output, columns = (row_par, col_par, cout)
    # s_ref : (2, NOP)          f32: row 0 per-column sum, row 1 sum of squares
    thp2, wp2, cin = x_ref.shape
    th, w = thp2 - 2, wp2 - 2

    x = x_ref[...]
    # In-VMEM im2col over the 3x3 original-resolution neighborhood: K = 9*cin.
    taps = []
    for a in range(3):
        for b in range(3):
            taps.append(x[a:a + th, b:b + w, :].reshape(th * w, cin))
    lhs = jnp.concatenate(taps, axis=-1)                     # (th*w, 9*cin) bf16

    acc = jnp.dot(lhs, w_ref[...], preferred_element_type=jnp.float32)
    y_ref[...] = acc.astype(y_ref.dtype)

    # Partial BatchNorm statistics (reduced in the wrapper); two separate stores.
    s_ref[0:1, :] = jnp.sum(acc, axis=0, keepdims=True)
    s_ref[1:2, :] = jnp.sum(acc * acc, axis=0, keepdims=True)


# ----------------------------------------------------------------------------
# Pass 2: fused BatchNorm apply + ReLU  (f32 FMA on a bf16 intermediate)
# ----------------------------------------------------------------------------
def _bn_relu_kernel(y_ref, scale_ref, shift_ref, o_ref):
    y = y_ref[...].astype(jnp.float32)
    o_ref[...] = jnp.maximum(y * scale_ref[...] + shift_ref[...], 0.0)


# ----------------------------------------------------------------------------
# Wrapper
# ----------------------------------------------------------------------------
@jax.jit
def up_conv_forward(x_nchw, conv_w, conv_b, bn_gamma, bn_beta):
    n, cin, h, w = x_nchw.shape
    cout = conv_w.shape[0]
    h2, w2 = 2 * h, 2 * w
    nout = 4 * cout                                  # (row parity, col parity, cout)
    nop = ((nout + 127) // 128) * 128 if nout >= 128 else nout

    budget = _vmem_budget_bytes()
    th = _pick_th(n, h, w, cin, nop, budget)
    n_t = h // th

    # bf16 original-resolution input, 1-px zero pad, halo'd row tiles.
    x_nhwc = jnp.transpose(x_nchw, (0, 2, 3, 1)).astype(jnp.bfloat16)
    xpad = jnp.pad(x_nhwc, ((0, 0), (1, 1), (1, 1), (0, 0)))
    rows = jnp.arange(n_t)[:, None] * th + jnp.arange(th + 2)[None, :]
    x_halo = xpad[:, rows]                           # (n, n_t, th+2, w+2, cin)

    wf = _fold_subpixel_weights(conv_w)              # (9*cin, 4*cout) f32
    wf = jnp.pad(wf, ((0, 0), (0, nop - nout))).astype(jnp.bfloat16)

    # Conv bias cancels exactly under training-mode BatchNorm (mean subtraction).
    del conv_b

    y_blk, stats = pl.pallas_call(
        _conv_stats_kernel,
        out_shape=(jax.ShapeDtypeStruct((n, n_t, th * w, nop), jnp.bfloat16),
                   jax.ShapeDtypeStruct((n, n_t, 2, nop), jnp.float32)),
        grid=(n, n_t),
        in_specs=[
            pl.BlockSpec((None, None, th + 2, w + 2, cin),
                         lambda i, j: (i, j, 0, 0, 0)),
            pl.BlockSpec((9 * cin, nop), lambda i, j: (0, 0)),
        ],
        out_specs=(
            pl.BlockSpec((None, None, th * w, nop), lambda i, j: (i, j, 0, 0)),
            pl.BlockSpec((None, None, 2, nop), lambda i, j: (i, j, 0, 0)),
        ),
        compiler_params=pltpu.CompilerParams(
            dimension_semantics=("parallel", "parallel"),
            vmem_limit_bytes=budget),
    )(x_halo, wf)

    # Finish BN statistics in f32 (biased variance, like PyTorch training
    # forward) and fold gamma/mean/var into a single (scale, shift) pair.
    count = jnp.float32(n * h2 * w2)
    ssum = jnp.sum(stats[:, :, 0, :nout], axis=(0, 1)).reshape(4, cout).sum(0)
    ssq = jnp.sum(stats[:, :, 1, :nout], axis=(0, 1)).reshape(4, cout).sum(0)
    mean = ssum / count
    var = jnp.maximum(ssq / count - mean * mean, 0.0)
    scale_c = bn_gamma.astype(jnp.float32) * lax.rsqrt(var + BN_EPS)
    shift_c = bn_beta.astype(jnp.float32) - mean * scale_c
    scale_n = jnp.pad(jnp.tile(scale_c, 4), (0, nop - nout)).reshape(1, nop)
    shift_n = jnp.pad(jnp.tile(shift_c, 4), (0, nop - nout)).reshape(1, nop)

    m_total = n * n_t * th * w
    tm = _pick_rows(m_total, nop, budget)
    y_flat = y_blk.reshape(m_total, nop)

    out_flat = pl.pallas_call(
        _bn_relu_kernel,
        out_shape=jax.ShapeDtypeStruct((m_total, nop), jnp.float32),
        grid=(m_total // tm,),
        in_specs=[
            pl.BlockSpec((tm, nop), lambda i: (i, 0)),
            pl.BlockSpec((1, nop), lambda i: (0, 0)),
            pl.BlockSpec((1, nop), lambda i: (0, 0)),
        ],
        out_specs=pl.BlockSpec((tm, nop), lambda i: (i, 0)),
        compiler_params=pltpu.CompilerParams(
            dimension_semantics=("parallel",),
            vmem_limit_bytes=budget),
    )(y_flat, scale_n, shift_n)

    # Pixel-shuffle the (row, col) parities and convert to NCHW (single XLA
    # transpose of the final output).
    out = out_flat[:, :nout].reshape(n, n_t, th, w, 2, 2, cout)
    out = jnp.transpose(out, (0, 6, 1, 2, 4, 3, 5)).reshape(n, cout, h2, w2)
    return out


# ----------------------------------------------------------------------------
# Pure-JAX reference (sanity check only; includes the conv bias on purpose)
# ----------------------------------------------------------------------------
def _upsample_nearest_2x_nhwc(x):
    n, h, w, c = x.shape
    x = jnp.broadcast_to(x[:, :, None, :, None, :], (n, h, 2, w, 2, c))
    return x.reshape(n, 2 * h, 2 * w, c)


def _reference(x_nchw, conv_w, conv_b, bn_gamma, bn_beta):
    x_nhwc = jnp.transpose(x_nchw, (0, 2, 3, 1)).astype(jnp.float32)
    x_up = _upsample_nearest_2x_nhwc(x_nhwc)
    w_hwio = jnp.transpose(conv_w, (2, 3, 1, 0)).astype(jnp.float32)
    y = lax.conv_general_dilated(
        x_up, w_hwio, window_strides=(1, 1), padding="SAME",
        dimension_numbers=("NHWC", "HWIO", "NHWC")) + conv_b
    mean = y.mean(axis=(0, 1, 2))
    var = y.var(axis=(0, 1, 2))                    # biased, like PyTorch training BN
    y = (y - mean) * lax.rsqrt(var + BN_EPS) * bn_gamma + bn_beta
    y = jnp.maximum(y, 0.0)
    return jnp.transpose(y, (0, 3, 1, 2))


if __name__ == "__main__":
    # Small shapes consistent with the module: up_conv(ch_in=4, ch_out=8)
    N, C_IN, H, W = 2, 4, 16, 16
    C_OUT = 8

    key = jax.random.PRNGKey(0)
    kx, kw, kb = jax.random.split(key, 3)

    x = jax.random.normal(kx, (N, C_IN, H, W), dtype=jnp.float32)
    conv_w = 0.1 * jax.random.normal(kw, (C_OUT, C_IN, 3, 3), dtype=jnp.float32)
    conv_b = 0.1 * jax.random.normal(kb, (C_OUT,), dtype=jnp.float32)
    bn_gamma = jnp.ones((C_OUT,), dtype=jnp.float32)     # PyTorch BN defaults
    bn_beta = jnp.zeros((C_OUT,), dtype=jnp.float32)

    out = jax.block_until_ready(
        up_conv_forward(x, conv_w, conv_b, bn_gamma, bn_beta))
    assert out.shape == (N, C_OUT, 2 * H, 2 * W), out.shape

    ref = _reference(x, conv_w, conv_b, bn_gamma, bn_beta)
    err = float(jnp.max(jnp.abs(out - ref)))
    # bf16 GEMM operands + bf16 intermediate vs. an f32 XLA reference; outputs
    # are BN-normalized (unit scale), so allow a few 1e-2 of absolute slack.
    assert err < 6e-2, err

    print("KERNEL_OK")
</pallas_src>

<mosaic_0001>
module attributes {stable_mosaic.version = 11 : i64} {
  func.func @_conv_stats_kernel(%arg0: i32, %arg1: i32, %arg2: memref<1x1x18x18x4xbf16, #tpu.memory_space<vmem>>, %arg3: memref<36x32xbf16, #tpu.memory_space<vmem>>, %arg4: memref<1x1x256x32xbf16, #tpu.memory_space<vmem>>, %arg5: memref<1x1x2x32xf32, #tpu.memory_space<vmem>>) attributes {dimension_semantics = [#tpu.dimension_semantics<parallel>, #tpu.dimension_semantics<parallel>], iteration_bounds = array<i64: 2, 1>, scalar_prefetch = 0 : i64, scratch_operands = 0 : i64, tpu.core_type = #tpu.core_type<tc>, window_params = [{transform_indices = @transform_0, window_bounds = array<i64: 1, 1, 18, 18, 4>}, {pipeline_mode = #tpu.pipeline_mode<synchronous>, transform_indices = @transform_1, window_bounds = array<i64: 36, 32>}, {transform_indices = @transform_2, window_bounds = array<i64: 1, 1, 256, 32>}, {transform_indices = @transform_3, window_bounds = array<i64: 1, 1, 2, 32>}]} {
    %c0 = arith.constant 0 : index
    %c0_0 = arith.constant 0 : index
    %c0_1 = arith.constant 0 : index
    %c0_2 = arith.constant 0 : index
    %c0_3 = arith.constant 0 : index
    %0 = vector.load %arg2[%c0, %c0_0, %c0_1, %c0_2, %c0_3] : memref<1x1x18x18x4xbf16, #tpu.memory_space<vmem>>, vector<1x1x18x18x4xbf16>
    %1 = vector.shape_cast %0 : vector<1x1x18x18x4xbf16> to vector<18x18x4xbf16>
    %2 = vector.extract_strided_slice %1 {offsets = [0, 0, 0], sizes = [16, 16, 4], strides = [1, 1, 1]} : vector<18x18x4xbf16> to vector<16x16x4xbf16>
    %3 = vector.shape_cast %2 : vector<16x16x4xbf16> to vector<256x4xbf16>
    %4 = vector.extract_strided_slice %1 {offsets = [0, 1, 0], sizes = [16, 16, 4], strides = [1, 1, 1]} : vector<18x18x4xbf16> to vector<16x16x4xbf16>
    %5 = vector.shape_cast %4 : vector<16x16x4xbf16> to vector<256x4xbf16>
    %6 = vector.extract_strided_slice %1 {offsets = [0, 2, 0], sizes = [16, 16, 4], strides = [1, 1, 1]} : vector<18x18x4xbf16> to vector<16x16x4xbf16>
    %7 = vector.shape_cast %6 : vector<16x16x4xbf16> to vector<256x4xbf16>
    %8 = vector.extract_strided_slice %1 {offsets = [1, 0, 0], sizes = [16, 16, 4], strides = [1, 1, 1]} : vector<18x18x4xbf16> to vector<16x16x4xbf16>
    %9 = vector.shape_cast %8 : vector<16x16x4xbf16> to vector<256x4xbf16>
    %10 = vector.extract_strided_slice %1 {offsets = [1, 1, 0], sizes = [16, 16, 4], strides = [1, 1, 1]} : vector<18x18x4xbf16> to vector<16x16x4xbf16>
    %11 = vector.shape_cast %10 : vector<16x16x4xbf16> to vector<256x4xbf16>
    %12 = vector.extract_strided_slice %1 {offsets = [1, 2, 0], sizes = [16, 16, 4], strides = [1, 1, 1]} : vector<18x18x4xbf16> to vector<16x16x4xbf16>
    %13 = vector.shape_cast %12 : vector<16x16x4xbf16> to vector<256x4xbf16>
    %14 = vector.extract_strided_slice %1 {offsets = [2, 0, 0], sizes = [16, 16, 4], strides = [1, 1, 1]} : vector<18x18x4xbf16> to vector<16x16x4xbf16>
    %15 = vector.shape_cast %14 : vector<16x16x4xbf16> to vector<256x4xbf16>
    %16 = vector.extract_strided_slice %1 {offsets = [2, 1, 0], sizes = [16, 16, 4], strides = [1, 1, 1]} : vector<18x18x4xbf16> to vector<16x16x4xbf16>
    %17 = vector.shape_cast %16 : vector<16x16x4xbf16> to vector<256x4xbf16>
    %18 = vector.extract_strided_slice %1 {offsets = [2, 2, 0], sizes = [16, 16, 4], strides = [1, 1, 1]} : vector<18x18x4xbf16> to vector<16x16x4xbf16>
    %19 = vector.shape_cast %18 : vector<16x16x4xbf16> to vector<256x4xbf16>
    %20 = tpu.concatenate %3, %5, %7, %9, %11, %13, %15, %17, %19 in 1 : vector<256x4xbf16>, vector<256x4xbf16>, vector<256x4xbf16>, vector<256x4xbf16>, vector<256x4xbf16>, vector<256x4xbf16>, vector<256x4xbf16>, vector<256x4xbf16>, vector<256x4xbf16> -> vector<256x36xbf16>
    %c0_4 = arith.constant 0 : index
    %c0_5 = arith.constant 0 : index
    %21 = vector.load %arg3[%c0_4, %c0_5] : memref<36x32xbf16, #tpu.memory_space<vmem>>, vector<36x32xbf16>
    %cst = arith.constant dense<0.000000e+00> : vector<256x32xf32>
    %22 = tpu.matmul %20, %21, %cst {dimension_numbers = #tpu.dot_dimension_numbers<[1], [0], [0], [1], [0, 0, 1, 1], [], []>} : vector<256x36xbf16>, vector<36x32xbf16>, vector<256x32xf32> -> vector<256x32xf32>
    %23 = arith.truncf %22 : vector<256x32xf32> to vector<256x32xbf16>
    %c0_6 = arith.constant 0 : index
    %c0_7 = arith.constant 0 : index
    %c0_8 = arith.constant 0 : index
    %c0_9 = arith.constant 0 : index
    %24 = vector.load %arg4[%c0_6, %c0_7, %c0_8, %c0_9] : memref<1x1x256x32xbf16, #tpu.memory_space<vmem>>, vector<1x1x256x32xbf16>
    %25 = vector.shape_cast %24 : vector<1x1x256x32xbf16> to vector<256x32xbf16>
    %26 = vector.shape_cast %23 : vector<256x32xbf16> to vector<1x1x256x32xbf16>
    tpu.vector_store %arg4[%c0_6, %c0_7, %c0_8, %c0_9], %26 {strides = array<i32>} : memref<1x1x256x32xbf16, #tpu.memory_space<vmem>>, vector<1x1x256x32xbf16>,
    %cst_10 = arith.constant dense<0.000000e+00> : vector<32xf32>
    %27 = vector.multi_reduction <add>, %22, %cst_10 [0] : vector<256x32xf32> to vector<32xf32>
    %28 = vector.shape_cast %27 : vector<32xf32> to vector<1x32xf32>
    %c0_11 = arith.constant 0 : index
    %c0_12 = arith.constant 0 : index
    %c0_13 = arith.constant 0 : index
    %c0_14 = arith.constant 0 : index
    %29 = vector.load %arg5[%c0_11, %c0_12, %c0_13, %c0_14] : memref<1x1x2x32xf32, #tpu.memory_space<vmem>>, vector<1x1x1x32xf32>
    %30 = vector.shape_cast %29 : vector<1x1x1x32xf32> to vector<1x32xf32>
    %31 = vector.shape_cast %28 : vector<1x32xf32> to vector<1x1x1x32xf32>
    tpu.vector_store %arg5[%c0_11, %c0_12, %c0_13, %c0_14], %31 {strides = array<i32>} : memref<1x1x2x32xf32, #tpu.memory_space<vmem>>, vector<1x1x1x32xf32>,
    %32 = arith.mulf %22, %22 : vector<256x32xf32>
    %cst_15 = arith.constant dense<0.000000e+00> : vector<32xf32>
    %33 = vector.multi_reduction <add>, %32, %cst_15 [0] : vector<256x32xf32> to vector<32xf32>
    %34 = vector.shape_cast %33 : vector<32xf32> to vector<1x32xf32>
    %c0_16 = arith.constant 0 : index
    %c0_17 = arith.constant 0 : index
    %c1 = arith.constant 1 : index
    %c0_18 = arith.constant 0 : index
    %35 = vector.load %arg5[%c0_16, %c0_17, %c1, %c0_18] : memref<1x1x2x32xf32, #tpu.memory_space<vmem>>, vector<1x1x1x32xf32>
    %36 = vector.shape_cast %35 : vector<1x1x1x32xf32> to vector<1x32xf32>
    %37 = vector.shape_cast %34 : vector<1x32xf32> to vector<1x1x1x32xf32>
    tpu.vector_store %arg5[%c0_16, %c0_17, %c1, %c0_18], %37 {strides = array<i32>} : memref<1x1x2x32xf32, #tpu.memory_space<vmem>>, vector<1x1x1x32xf32>,
    return
  }
  func.func @transform_0(%arg0: i32, %arg1: i32) -> (i32, i32, i32, i32, i32) {
    %c0_i32 = arith.constant 0 : i32
    %c0_i32_0 = arith.constant 0 : i32
    %c0_i32_1 = arith.constant 0 : i32
    %c0_i32_2 = arith.constant 0 : i32
    return %arg0, %arg1, %c0_i32, %c0_i32_0, %c0_i32_1 : i32, i32, i32, i32, i32
  }
  func.func @transform_1(%arg0: i32, %arg1: i32) -> (i32, i32) {
    %c0_i32 = arith.constant 0 : i32
    %c0_i32_0 = arith.constant 0 : i32
    %c0_i32_1 = arith.constant 0 : i32
    return %c0_i32, %c0_i32_0 : i32, i32
  }
  func.func @transform_2(%arg0: i32, %arg1: i32) -> (i32, i32, i32, i32) {
    %c0_i32 = arith.constant 0 : i32
    %c0_i32_0 = arith.constant 0 : i32
    %c0_i32_1 = arith.constant 0 : i32
    return %arg0, %arg1, %c0_i32, %c0_i32_0 : i32, i32, i32, i32
  }
  func.func @transform_3(%arg0: i32, %arg1: i32) -> (i32, i32, i32, i32) {
    %c0_i32 = arith.constant 0 : i32
    %c0_i32_0 = arith.constant 0 : i32
    %c0_i32_1 = arith.constant 0 : i32
    return %arg0, %arg1, %c0_i32, %c0_i32_0 : i32, i32, i32, i32
  }
}

module attributes {stable_mosaic.version = 11 : i64} {
  func.func @_bn_relu_kernel(%arg0: i32, %arg1: memref<512x32xbf16, #tpu.memory_space<vmem>>, %arg2: memref<1x32xf32, #tpu.memory_space<vmem>>, %arg3: memref<1x32xf32, #tpu.memory_space<vmem>>, %arg4: memref<512x32xf32, #tpu.memory_space<vmem>>) attributes {dimension_semantics = [#tpu.dimension_semantics<parallel>], iteration_bounds = array<i64: 1>, scalar_prefetch = 0 : i64, scratch_operands = 0 : i64, tpu.core_type = #tpu.core_type<tc>, window_params = [{transform_indices = @transform_0, window_bounds = array<i64: 512, 32>}, {pipeline_mode = #tpu.pipeline_mode<synchronous>, transform_indices = @transform_1, window_bounds = array<i64: 1, 32>}, {pipeline_mode = #tpu.pipeline_mode<synchronous>, transform_indices = @transform_2, window_bounds = array<i64: 1, 32>}, {transform_indices = @transform_3, window_bounds = array<i64: 512, 32>}]} {
    %c0 = arith.constant 0 : index
    %c0_0 = arith.constant 0 : index
    %0 = vector.load %arg1[%c0, %c0_0] : memref<512x32xbf16, #tpu.memory_space<vmem>>, vector<512x32xbf16>
    %1 = arith.extf %0 : vector<512x32xbf16> to vector<512x32xf32>
    %c0_1 = arith.constant 0 : index
    %c0_2 = arith.constant 0 : index
    %2 = vector.load %arg2[%c0_1, %c0_2] : memref<1x32xf32, #tpu.memory_space<vmem>>, vector<1x32xf32>
    %3 = vector.broadcast %2 : vector<1x32xf32> to vector<512x32xf32>
    %4 = arith.mulf %1, %3 : vector<512x32xf32>
    %c0_3 = arith.constant 0 : index
    %c0_4 = arith.constant 0 : index
    %5 = vector.load %arg3[%c0_3, %c0_4] : memref<1x32xf32, #tpu.memory_space<vmem>>, vector<1x32xf32>
    %6 = vector.broadcast %5 : vector<1x32xf32> to vector<512x32xf32>
    %7 = arith.addf %4, %6 : vector<512x32xf32>
    %cst = arith.constant 0.000000e+00 : f32
    %8 = vector.broadcast %cst : f32 to vector<512x32xf32>
    %9 = arith.maximumf %7, %8 : vector<512x32xf32>
    %c0_5 = arith.constant 0 : index
    %c0_6 = arith.constant 0 : index
    %10 = vector.load %arg4[%c0_5, %c0_6] : memref<512x32xf32, #tpu.memory_space<vmem>>, vector<512x32xf32>
    tpu.vector_store %arg4[%c0_5, %c0_6], %9 {strides = array<i32>} : memref<512x32xf32, #tpu.memory_space<vmem>>, vector<512x32xf32>,
    return
  }
  func.func @transform_0(%arg0: i32) -> (i32, i32) {
    %c0_i32 = arith.constant 0 : i32
    %c0_i32_0 = arith.constant 0 : i32
    return %arg0, %c0_i32 : i32, i32
  }
  func.func @transform_1(%arg0: i32) -> (i32, i32) {
    %c0_i32 = arith.constant 0 : i32
    %c0_i32_0 = arith.constant 0 : i32
    %c0_i32_1 = arith.constant 0 : i32
    return %c0_i32, %c0_i32_0 : i32, i32
  }
  func.func @transform_2(%arg0: i32) -> (i32, i32) {
    %c0_i32 = arith.constant 0 : i32
    %c0_i32_0 = arith.constant 0 : i32
    %c0_i32_1 = arith.constant 0 : i32
    return %c0_i32, %c0_i32_0 : i32, i32
  }
  func.func @transform_3(%arg0: i32) -> (i32, i32) {
    %c0_i32 = arith.constant 0 : i32
    %c0_i32_0 = arith.constant 0 : i32
    return %arg0, %c0_i32 : i32, i32
  }
}

</mosaic_0001>

<llo_original>
// kernel: tile.18
$region0: #{tile.18}
  #allocation0 [shape = 's32[1]{0}', space=sflag, size = 0x4, scoped, tag = 'scoped memory for tile.18']
  %s0 = inlined_call_operand.vmem [shape: f32[8], index: 0, kind: input, shape index: {}]
  %s1 = inlined_call_operand.vmem [shape: f32[4,8], index: 1, kind: output, shape index: {}]
  // Predicated region
  $region2: #{tile.18} parent=0 // pred_check
    _
  $region3: #{tile.18} parent=0 // pred_check_branch
    %3 = sbr.rel (0) target = $region5
  $region4: #{tile.18} parent=0 // pred_region
    _
  $region5: #{tile.18} parent=0 // pred_fallthru
    _
  %v4 = vld [vmem:[%s0] ss:$0 sm:$0xff]
  %5 = vst [vmem:[%s1] sm:$0xf] %v4

// kernel: up_conv_forward.3
$region0: #{up_conv_forward.3}
  #allocation0 [shape = 'u32[]', space=smem, size = 0x4, offset = 0x4, fixed_abs, tag = 'smem constant byte address 0x4 - core index']
  #allocation1 [shape = 'u32[72,128]{1,0:T(1,128)}', space=vmem, size = 0x9000, scoped, tag = 'internal scratch']
  %s0 = inlined_call_operand.vmem [shape: bf16[512,32], index: 0, kind: input, shape index: {}]
  %s1 = inlined_call_operand.vmem [shape: f32[1,32], index: 1, kind: input, shape index: {}]
  %s2 = inlined_call_operand.vmem [shape: f32[1,32], index: 2, kind: input, shape index: {}]
  %s3 = inlined_call_operand.vmem [shape: f32[512,32], index: 3, kind: output, shape index: {}]
  %s4 = sld [smem:[#allocation0]]
  $region22: #{up_conv_forward.3} parent=0
    _
  %s6 = ssub.s32 1, %s4
  %s7 = scalar_select 0, %s6, %s4
  // Predicated region
  $region2: #{up_conv_forward.3} parent=0 // pred_check
    _
  $region3: #{up_conv_forward.3} parent=0 // pred_check_branch
    %9 = sbr.rel (0) target = $region5
  $region4: #{up_conv_forward.3} parent=0 // pred_region
    _
  $region5: #{up_conv_forward.3} parent=0 // pred_fallthru
    _
  // Predicated region
  $region6: #{up_conv_forward.3} parent=0 // pred_check
    _
  $region7: #{up_conv_forward.3} parent=0 // pred_check_branch
    %11 = sbr.rel (0) target = $region9
  $region8: #{up_conv_forward.3} parent=0 // pred_region
    _
  $region9: #{up_conv_forward.3} parent=0 // pred_fallthru
    _
  // Predicated region
  $region10: #{up_conv_forward.3} parent=0 // pred_check
    _
  $region11: #{up_conv_forward.3} parent=0 // pred_check_branch
    %13 = sbr.rel (0) target = $region13
  $region12: #{up_conv_forward.3} parent=0 // pred_region
    _
  $region13: #{up_conv_forward.3} parent=0 // pred_fallthru
    _
  %v14 = vld [vmem:[%s0] sm:$0xf]
  %v15 = vld [vmem:[%s0 + $0x4] sm:$0xf]
  %v16 = vld [vmem:[%s0 + $0x8] sm:$0xf]
  %v17 = vld [vmem:[%s0 + $0xc] sm:$0xf]
  %v18 = vld [vmem:[%s0 + $0x10] sm:$0xf]
  %v19 = vld [vmem:[%s0 + $0x14] sm:$0xf]
  %v20 = vld [vmem:[%s0 + $0x18] sm:$0xf]
  %v21 = vld [vmem:[%s0 + $0x1c] sm:$0xf]
  %v22 = vld [vmem:[%s0 + $0x20] sm:$0xf]
  %v23 = vld [vmem:[%s0 + $0x24] sm:$0xf]
  %v24 = vld [vmem:[%s0 + $0x28] sm:$0xf]
  %v25 = vld [vmem:[%s0 + $0x2c] sm:$0xf]
  %v26 = vld [vmem:[%s0 + $0x30] sm:$0xf]
  %v27 = vld [vmem:[%s0 + $0x34] sm:$0xf]
  %v28 = vld [vmem:[%s0 + $0x38] sm:$0xf]
  %v29 = vld [vmem:[%s0 + $0x3c] sm:$0xf]
  %v30 = vld [vmem:[%s0 + $0x40] sm:$0xf]
  %v31 = vld [vmem:[%s0 + $0x44] sm:$0xf]
  %v32 = vld [vmem:[%s0 + $0x48] sm:$0xf]
  %v33 = vld [vmem:[%s0 + $0x4c] sm:$0xf]
  %v34 = vld [vmem:[%s0 + $0x50] sm:$0xf]
  %v35 = vld [vmem:[%s0 + $0x54] sm:$0xf]
  %v36 = vld [vmem:[%s0 + $0x58] sm:$0xf]
  %v37 = vld [vmem:[%s0 + $0x5c] sm:$0xf]
  %v38 = vld [vmem:[%s0 + $0x60] sm:$0xf]
  %v39 = vld [vmem:[%s0 + $0x64] sm:$0xf]
  %v40 = vld [vmem:[%s0 + $0x68] sm:$0xf]
  %v41 = vld [vmem:[%s0 + $0x6c] sm:$0xf]
  %v42 = vld [vmem:[%s0 + $0x70] sm:$0xf]
  %v43 = vld [vmem:[%s0 + $0x74] sm:$0xf]
  %v44 = vld [vmem:[%s0 + $0x78] sm:$0xf]
  %v45 = vld [vmem:[%s0 + $0x7c] sm:$0xf]
  %v46 = vld [vmem:[%s0 + $0x80] sm:$0xf]
  %v47 = vld [vmem:[%s0 + $0x84] sm:$0xf]
  %v48 = vld [vmem:[%s0 + $0x88] sm:$0xf]
  %v49 = vld [vmem:[%s0 + $0x8c] sm:$0xf]
  %v50 = vld [vmem:[%s0 + $0x90] sm:$0xf]
  %v51 = vld [vmem:[%s0 + $0x94] sm:$0xf]
  %v52 = vld [vmem:[%s0 + $0x98] sm:$0xf]
  %v53 = vld [vmem:[%s0 + $0x9c] sm:$0xf]
  %v54 = vld [vmem:[%s0 + $0xa0] sm:$0xf]
  %v55 = vld [vmem:[%s0 + $0xa4] sm:$0xf]
  %v56 = vld [vmem:[%s0 + $0xa8] sm:$0xf]
  %v57 = vld [vmem:[%s0 + $0xac] sm:$0xf]
  %v58 = vld [vmem:[%s0 + $0xb0] sm:$0xf]
  %v59 = vld [vmem:[%s0 + $0xb4] sm:$0xf]
  %v60 = vld [vmem:[%s0 + $0xb8] sm:$0xf]
  %v61 = vld [vmem:[%s0 + $0xbc] sm:$0xf]
  %v62 = vld [vmem:[%s0 + $0xc0] sm:$0xf]
  %v63 = vld [vmem:[%s0 + $0xc4] sm:$0xf]
  %v64 = vld [vmem:[%s0 + $0xc8] sm:$0xf]
  %v65 = vld [vmem:[%s0 + $0xcc] sm:$0xf]
  %v66 = vld [vmem:[%s0 + $0xd0] sm:$0xf]
  %v67 = vld [vmem:[%s0 + $0xd4] sm:$0xf]
  %v68 = vld [vmem:[%s0 + $0xd8] sm:$0xf]
  %v69 = vld [vmem:[%s0 + $0xdc] sm:$0xf]
  %v70 = vld [vmem:[%s0 + $0xe0] sm:$0xf]
  %v71 = vld [vmem:[%s0 + $0xe4] sm:$0xf]
  %v72 = vld [vmem:[%s0 + $0xe8] sm:$0xf]
  %v73 = vld [vmem:[%s0 + $0xec] sm:$0xf]
  %v74 = vld [vmem:[%s0 + $0xf0] sm:$0xf]
  %v75 = vld [vmem:[%s0 + $0xf4] sm:$0xf]
  %v76 = vld [vmem:[%s0 + $0xf8] sm:$0xf]
  %v77 = vld [vmem:[%s0 + $0xfc] sm:$0xf]
  %v78 = vunpack.c.l.bf16 %v14
  %v79 = vunpack.c.l.bf16 %v15
  %v80 = vunpack.c.l.bf16 %v16
  %v81 = vunpack.c.l.bf16 %v17
  %v82 = vunpack.c.l.bf16 %v18
  %v83 = vunpack.c.l.bf16 %v19
  %v84 = vunpack.c.l.bf16 %v20
  %v85 = vunpack.c.l.bf16 %v21
  %v86 = vunpack.c.l.bf16 %v22
  %v87 = vunpack.c.l.bf16 %v23
  %v88 = vunpack.c.l.bf16 %v24
  %v89 = vunpack.c.l.bf16 %v25
  %v90 = vunpack.c.l.bf16 %v26
  %v91 = vunpack.c.l.bf16 %v27
  %v92 = vunpack.c.l.bf16 %v28
  %v93 = vunpack.c.l.bf16 %v29
  %v94 = vunpack.c.l.bf16 %v30
  %v95 = vunpack.c.l.bf16 %v31
  %v96 = vunpack.c.l.bf16 %v32
  %v97 = vunpack.c.l.bf16 %v33
  %v98 = vunpack.c.l.bf16 %v34
  %v99 = vunpack.c.l.bf16 %v35
  %v100 = vunpack.c.l.bf16 %v36
  %v101 = vunpack.c.l.bf16 %v37
  %v102 = vunpack.c.l.bf16 %v38
  %v103 = vunpack.c.l.bf16 %v39
  %v104 = vunpack.c.l.bf16 %v40
  %v105 = vunpack.c.l.bf16 %v41
  %v106 = vunpack.c.l.bf16 %v42
  %v107 = vunpack.c.l.bf16 %v43
  %v108 = vunpack.c.l.bf16 %v44
  %v109 = vunpack.c.l.bf16 %v45
  %v110 = vunpack.c.l.bf16 %v46
  %v111 = vunpack.c.l.bf16 %v47
  %v112 = vunpack.c.l.bf16 %v48
  %v113 = vunpack.c.l.bf16 %v49
  %v114 = vunpack.c.l.bf16 %v50
  %v115 = vunpack.c.l.bf16 %v51
  %v116 = vunpack.c.l.bf16 %v52
  %v117 = vunpack.c.l.bf16 %v53
  %v118 = vunpack.c.l.bf16 %v54
  %v119 = vunpack.c.l.bf16 %v55
  %v120 = vunpack.c.l.bf16 %v56
  %v121 = vunpack.c.l.bf16 %v57
  %v122 = vunpack.c.l.bf16 %v58
  %v123 = vunpack.c.l.bf16 %v59
  %v124 = vunpack.c.l.bf16 %v60
  %v125 = vunpack.c.l.bf16 %v61
  %v126 = vunpack.c.l.bf16 %v62
  %v127 = vunpack.c.l.bf16 %v63
  %v128 = vunpack.c.l.bf16 %v64
  %v129 = vunpack.c.l.bf16 %v65
  %v130 = vunpack.c.l.bf16 %v66
  %v131 = vunpack.c.l.bf16 %v67
  %v132 = vunpack.c.l.bf16 %v68
  %v133 = vunpack.c.l.bf16 %v69
  %v134 = vunpack.c.l.bf16 %v70
  %v135 = vunpack.c.l.bf16 %v71
  %v136 = vunpack.c.l.bf16 %v72
  %v137 = vunpack.c.l.bf16 %v73
  %v138 = vunpack.c.l.bf16 %v74
  %v139 = vunpack.c.l.bf16 %v75
  %v140 = vunpack.c.l.bf16 %v76
  %v141 = vunpack.c.l.bf16 %v77
  %v142 = vld [vmem:[%s1] sm:$0x1]
  %v144 = vperm.slane %v142, 0
  %v146 = vmul.f32 %v78, %v144
  %v147 = vmul.f32 %v79, %v144
  %v148 = vmul.f32 %v80, %v144
  %v149 = vmul.f32 %v81, %v144
  %v150 = vmul.f32 %v82, %v144
  %v151 = vmul.f32 %v83, %v144
  %v152 = vmul.f32 %v84, %v144
  %v153 = vmul.f32 %v85, %v144
  %v154 = vmul.f32 %v86, %v144
  %v155 = vmul.f32 %v87, %v144
  %v156 = vmul.f32 %v88, %v144
  %v157 = vmul.f32 %v89, %v144
  %v158 = vmul.f32 %v90, %v144
  %v159 = vmul.f32 %v91, %v144
  %v160 = vmul.f32 %v92, %v144
  %v161 = vmul.f32 %v93, %v144
  %v162 = vmul.f32 %v94, %v144
  %v163 = vmul.f32 %v95, %v144
  %v164 = vmul.f32 %v96, %v144
  %v165 = vmul.f32 %v97, %v144
  %v166 = vmul.f32 %v98, %v144
  %v167 = vmul.f32 %v99, %v144
  %v168 = vmul.f32 %v100, %v144
  %v169 = vmul.f32 %v101, %v144
  %v170 = vmul.f32 %v102, %v144
  %v171 = vmul.f32 %v103, %v144
  %v172 = vmul.f32 %v104, %v144
  %v173 = vmul.f32 %v105, %v144
  %v174 = vmul.f32 %v106, %v144
  %v175 = vmul.f32 %v107, %v144
  %v176 = vmul.f32 %v108, %v144
  %v177 = vmul.f32 %v109, %v144
  %v178 = vmul.f32 %v110, %v144
  %v179 = vmul.f32 %v111, %v144
  %v180 = vmul.f32 %v112, %v144
  %v181 = vmul.f32 %v113, %v144
  %v182 = vmul.f32 %v114, %v144
  %v183 = vmul.f32 %v115, %v144
  %v184 = vmul.f32 %v116, %v144
  %v185 = vmul.f32 %v117, %v144
  %v186 = vmul.f32 %v118, %v144
  %v187 = vmul.f32 %v119, %v144
  %v188 = vmul.f32 %v120, %v144
  %v189 = vmul.f32 %v121, %v144
  %v190 = vmul.f32 %v122, %v144
  %v191 = vmul.f32 %v123, %v144
  %v192 = vmul.f32 %v124, %v144
  %v193 = vmul.f32 %v125, %v144
  %v194 = vmul.f32 %v126, %v144
  %v195 = vmul.f32 %v127, %v144
  %v196 = vmul.f32 %v128, %v144
  %v197 = vmul.f32 %v129, %v144
  %v198 = vmul.f32 %v130, %v144
  %v199 = vmul.f32 %v131, %v144
  %v200 = vmul.f32 %v132, %v144
  %v201 = vmul.f32 %v133, %v144
  %v202 = vmul.f32 %v134, %v144
  %v203 = vmul.f32 %v135, %v144
  %v204 = vmul.f32 %v136, %v144
  %v205 = vmul.f32 %v137, %v144
  %v206 = vmul.f32 %v138, %v144
  %v207 = vmul.f32 %v139, %v144
  %v208 = vmul.f32 %v140, %v144
  %v209 = vmul.f32 %v141, %v144
  %v210 = vld [vmem:[%s2] sm:$0x1]
  %v212 = vperm.slane %v210, 0
  %v214 = vadd.f32 %v146, %v212
  %v215 = vadd.f32 %v147, %v212
  %v216 = vadd.f32 %v148, %v212
  %v217 = vadd.f32 %v149, %v212
  %v218 = vadd.f32 %v150, %v212
  %v219 = vadd.f32 %v151, %v212
  %v220 = vadd.f32 %v152, %v212
  %v221 = vadd.f32 %v153, %v212
  %v222 = vadd.f32 %v154, %v212
  %v223 = vadd.f32 %v155, %v212
  %v224 = vadd.f32 %v156, %v212
  %v225 = vadd.f32 %v157, %v212
  %v226 = vadd.f32 %v158, %v212
  %v227 = vadd.f32 %v159, %v212
  %v228 = vadd.f32 %v160, %v212
  %v229 = vadd.f32 %v161, %v212
  %v230 = vadd.f32 %v162, %v212
  %v231 = vadd.f32 %v163, %v212
  %v232 = vadd.f32 %v164, %v212
  %v233 = vadd.f32 %v165, %v212
  %v234 = vadd.f32 %v166, %v212
  %v235 = vadd.f32 %v167, %v212
  %v236 = vadd.f32 %v168, %v212
  %v237 = vadd.f32 %v169, %v212
  %v238 = vadd.f32 %v170, %v212
  %v239 = vadd.f32 %v171, %v212
  %v240 = vadd.f32 %v172, %v212
  %v241 = vadd.f32 %v173, %v212
  %v242 = vadd.f32 %v174, %v212
  %v243 = vadd.f32 %v175, %v212
  %v244 = vadd.f32 %v176, %v212
  %v245 = vadd.f32 %v177, %v212
  %v246 = vadd.f32 %v178, %v212
  %v247 = vadd.f32 %v179, %v212
  %v248 = vadd.f32 %v180, %v212
  %v249 = vadd.f32 %v181, %v212
  %v250 = vadd.f32 %v182, %v212
  %v251 = vadd.f32 %v183, %v212
  %v252 = vadd.f32 %v184, %v212
  %v253 = vadd.f32 %v185, %v212
  %v254 = vadd.f32 %v186, %v212
  %v255 = vadd.f32 %v187, %v212
  %v256 = vadd.f32 %v188, %v212
  %v257 = vadd.f32 %v189, %v212
  %v258 = vadd.f32 %v190, %v212
  %v259 = vadd.f32 %v191, %v212
  %v260 = vadd.f32 %v192, %v212
  %v261 = vadd.f32 %v193, %v212
  %v262 = vadd.f32 %v194, %v212
  %v263 = vadd.f32 %v195, %v212
  %v264 = vadd.f32 %v196, %v212
  %v265 = vadd.f32 %v197, %v212
  %v266 = vadd.f32 %v198, %v212
  %v267 = vadd.f32 %v199, %v212
  %v268 = vadd.f32 %v200, %v212
  %v269 = vadd.f32 %v201, %v212
  %v270 = vadd.f32 %v202, %v212
  %v271 = vadd.f32 %v203, %v212
  %v272 = vadd.f32 %v204, %v212
  %v273 = vadd.f32 %v205, %v212
  %v274 = vadd.f32 %v206, %v212
  %v275 = vadd.f32 %v207, %v212
  %v276 = vadd.f32 %v208, %v212
  %v277 = vadd.f32 %v209, %v212
  %v278 = vmax.f32 %v214, 0.0
  %v279 = vmax.f32 %v215, 0.0
  %v280 = vmax.f32 %v216, 0.0
  %v281 = vmax.f32 %v217, 0.0
  %v282 = vmax.f32 %v218, 0.0
  %v283 = vmax.f32 %v219, 0.0
  %v284 = vmax.f32 %v220, 0.0
  %v285 = vmax.f32 %v221, 0.0
  %v286 = vmax.f32 %v222, 0.0
  %v287 = vmax.f32 %v223, 0.0
  %v288 = vmax.f32 %v224, 0.0
  %v289 = vmax.f32 %v225, 0.0
  %v290 = vmax.f32 %v226, 0.0
  %v291 = vmax.f32 %v227, 0.0
  %v292 = vmax.f32 %v228, 0.0
  %v293 = vmax.f32 %v229, 0.0
  %v294 = vmax.f32 %v230, 0.0
  %v295 = vmax.f32 %v231, 0.0
  %v296 = vmax.f32 %v232, 0.0
  %v297 = vmax.f32 %v233, 0.0
  %v298 = vmax.f32 %v234, 0.0
  %v299 = vmax.f32 %v235, 0.0
  %v300 = vmax.f32 %v236, 0.0
  %v301 = vmax.f32 %v237, 0.0
  %v302 = vmax.f32 %v238, 0.0
  %v303 = vmax.f32 %v239, 0.0
  %v304 = vmax.f32 %v240, 0.0
  %v305 = vmax.f32 %v241, 0.0
  %v306 = vmax.f32 %v242, 0.0
  %v307 = vmax.f32 %v243, 0.0
  %v308 = vmax.f32 %v244, 0.0
  %v309 = vmax.f32 %v245, 0.0
  %v310 = vmax.f32 %v246, 0.0
  %v311 = vmax.f32 %v247, 0.0
  %v312 = vmax.f32 %v248, 0.0
  %v313 = vmax.f32 %v249, 0.0
  %v314 = vmax.f32 %v250, 0.0
  %v315 = vmax.f32 %v251, 0.0
  %v316 = vmax.f32 %v252, 0.0
  %v317 = vmax.f32 %v253, 0.0
  %v318 = vmax.f32 %v254, 0.0
  %v319 = vmax.f32 %v255, 0.0
  %v320 = vmax.f32 %v256, 0.0
  %v321 = vmax.f32 %v257, 0.0
  %v322 = vmax.f32 %v258, 0.0
  %v323 = vmax.f32 %v259, 0.0
  %v324 = vmax.f32 %v260, 0.0
  %v325 = vmax.f32 %v261, 0.0
  %v326 = vmax.f32 %v262, 0.0
  %v327 = vmax.f32 %v263, 0.0
  %v328 = vmax.f32 %v264, 0.0
  %v329 = vmax.f32 %v265, 0.0
  %v330 = vmax.f32 %v266, 0.0
  %v331 = vmax.f32 %v267, 0.0
  %v332 = vmax.f32 %v268, 0.0
  %v333 = vmax.f32 %v269, 0.0
  %v334 = vmax.f32 %v270, 0.0
  %v335 = vmax.f32 %v271, 0.0
  %v336 = vmax.f32 %v272, 0.0
  %v337 = vmax.f32 %v273, 0.0
  %v338 = vmax.f32 %v274, 0.0
  %v339 = vmax.f32 %v275, 0.0
  %v340 = vmax.f32 %v276, 0.0
  %v341 = vmax.f32 %v277, 0.0
  %vm342 = vcmask 261120
  %343 = vst.msk [vmem:[%s3] sm:$0xff] %vm342, %v278
  %344 = vst.msk [vmem:[%s3 + $0x8] sm:$0xff] %vm342, %v279
  %345 = vst.msk [vmem:[%s3 + $0x10] sm:$0xff] %vm342, %v280
  %346 = vst.msk [vmem:[%s3 + $0x18] sm:$0xff] %vm342, %v281
  %347 = vst.msk [vmem:[%s3 + $0x20] sm:$0xff] %vm342, %v282
  %348 = vst.msk [vmem:[%s3 + $0x28] sm:$0xff] %vm342, %v283
  %349 = vst.msk [vmem:[%s3 + $0x30] sm:$0xff] %vm342, %v284
  %350 = vst.msk [vmem:[%s3 + $0x38] sm:$0xff] %vm342, %v285
  %351 = vst.msk [vmem:[%s3 + $0x40] sm:$0xff] %vm342, %v286
  %352 = vst.msk [vmem:[%s3 + $0x48] sm:$0xff] %vm342, %v287
  %353 = vst.msk [vmem:[%s3 + $0x50] sm:$0xff] %vm342, %v288
  %354 = vst.msk [vmem:[%s3 + $0x58] sm:$0xff] %vm342, %v289
  %355 = vst.msk [vmem:[%s3 + $0x60] sm:$0xff] %vm342, %v290
  %356 = vst.msk [vmem:[%s3 + $0x68] sm:$0xff] %vm342, %v291
  %357 = vst.msk [vmem:[%s3 + $0x70] sm:$0xff] %vm342, %v292
  %358 = vst.msk [vmem:[%s3 + $0x78] sm:$0xff] %vm342, %v293
  %359 = vst.msk [vmem:[%s3 + $0x80] sm:$0xff] %vm342, %v294
  %360 = vst.msk [vmem:[%s3 + $0x88] sm:$0xff] %vm342, %v295
  %361 = vst.msk [vmem:[%s3 + $0x90] sm:$0xff] %vm342, %v296
  %362 = vst.msk [vmem:[%s3 + $0x98] sm:$0xff] %vm342, %v297
  %363 = vst.msk [vmem:[%s3 + $0xa0] sm:$0xff] %vm342, %v298
  %364 = vst.msk [vmem:[%s3 + $0xa8] sm:$0xff] %vm342, %v299
  %365 = vst.msk [vmem:[%s3 + $0xb0] sm:$0xff] %vm342, %v300
  %366 = vst.msk [vmem:[%s3 + $0xb8] sm:$0xff] %vm342, %v301
  %367 = vst.msk [vmem:[%s3 + $0xc0] sm:$0xff] %vm342, %v302
  %368 = vst.msk [vmem:[%s3 + $0xc8] sm:$0xff] %vm342, %v303
  %369 = vst.msk [vmem:[%s3 + $0xd0] sm:$0xff] %vm342, %v304
  %370 = vst.msk [vmem:[%s3 + $0xd8] sm:$0xff] %vm342, %v305
  %371 = vst.msk [vmem:[%s3 + $0xe0] sm:$0xff] %vm342, %v306
  %372 = vst.msk [vmem:[%s3 + $0xe8] sm:$0xff] %vm342, %v307
  %373 = vst.msk [vmem:[%s3 + $0xf0] sm:$0xff] %vm342, %v308
  %374 = vst.msk [vmem:[%s3 + $0xf8] sm:$0xff] %vm342, %v309
  %375 = vst.msk [vmem:[%s3 + $0x100] sm:$0xff] %vm342, %v310
  %376 = vst.msk [vmem:[%s3 + $0x108] sm:$0xff] %vm342, %v311
  %377 = vst.msk [vmem:[%s3 + $0x110] sm:$0xff] %vm342, %v312
  %378 = vst.msk [vmem:[%s3 + $0x118] sm:$0xff] %vm342, %v313
  %379 = vst.msk [vmem:[%s3 + $0x120] sm:$0xff] %vm342, %v314
  %380 = vst.msk [vmem:[%s3 + $0x128] sm:$0xff] %vm342, %v315
  %381 = vst.msk [vmem:[%s3 + $0x130] sm:$0xff] %vm342, %v316
  %382 = vst.msk [vmem:[%s3 + $0x138] sm:$0xff] %vm342, %v317
  %383 = vst.msk [vmem:[%s3 + $0x140] sm:$0xff] %vm342, %v318
  %384 = vst.msk [vmem:[%s3 + $0x148] sm:$0xff] %vm342, %v319
  %385 = vst.msk [vmem:[%s3 + $0x150] sm:$0xff] %vm342, %v320
  %386 = vst.msk [vmem:[%s3 + $0x158] sm:$0xff] %vm342, %v321
  %387 = vst.msk [vmem:[%s3 + $0x160] sm:$0xff] %vm342, %v322
  %388 = vst.msk [vmem:[%s3 + $0x168] sm:$0xff] %vm342, %v323
  %389 = vst.msk [vmem:[%s3 + $0x170] sm:$0xff] %vm342, %v324
  %390 = vst.msk [vmem:[%s3 + $0x178] sm:$0xff] %vm342, %v325
  %391 = vst.msk [vmem:[%s3 + $0x180] sm:$0xff] %vm342, %v326
  %392 = vst.msk [vmem:[%s3 + $0x188] sm:$0xff] %vm342, %v327
  %393 = vst.msk [vmem:[%s3 + $0x190] sm:$0xff] %vm342, %v328
  %394 = vst.msk [vmem:[%s3 + $0x198] sm:$0xff] %vm342, %v329
  %395 = vst.msk [vmem:[%s3 + $0x1a0] sm:$0xff] %vm342, %v330
  %396 = vst.msk [vmem:[%s3 + $0x1a8] sm:$0xff] %vm342, %v331
  %397 = vst.msk [vmem:[%s3 + $0x1b0] sm:$0xff] %vm342, %v332
  %398 = vst.msk [vmem:[%s3 + $0x1b8] sm:$0xff] %vm342, %v333
  %399 = vst.msk [vmem:[%s3 + $0x1c0] sm:$0xff] %vm342, %v334
  %400 = vst.msk [vmem:[%s3 + $0x1c8] sm:$0xff] %vm342, %v335
  %401 = vst.msk [vmem:[%s3 + $0x1d0] sm:$0xff] %vm342, %v336
  %402 = vst.msk [vmem:[%s3 + $0x1d8] sm:$0xff] %vm342, %v337
  %403 = vst.msk [vmem:[%s3 + $0x1e0] sm:$0xff] %vm342, %v338
  %404 = vst.msk [vmem:[%s3 + $0x1e8] sm:$0xff] %vm342, %v339
  %405 = vst.msk [vmem:[%s3 + $0x1f0] sm:$0xff] %vm342, %v340
  %406 = vst.msk [vmem:[%s3 + $0x1f8] sm:$0xff] %vm342, %v341
  // Predicated region
  $region14: #{up_conv_forward.3} parent=0 // pred_check
    _
  $region15: #{up_conv_forward.3} parent=0 // pred_check_branch
    %408 = sbr.rel (0) target = $region17
  $region16: #{up_conv_forward.3} parent=0 // pred_region
    _
  $region17: #{up_conv_forward.3} parent=0 // pred_fallthru
    _
  // Predicated region
  $region18: #{up_conv_forward.3} parent=0 // pred_check
    _
  $region19: #{up_conv_forward.3} parent=0 // pred_check_branch
    %410 = sbr.rel (0) target = $region21
  $region20: #{up_conv_forward.3} parent=0 // pred_region
    _
  $region21: #{up_conv_forward.3} parent=0 // pred_fallthru
    _

// kernel: up_conv_forward.2
$region0: #{up_conv_forward.2}
  #allocation0 [shape = 'u32[]', space=smem, size = 0x4, offset = 0x4, fixed_abs, tag = 'smem constant byte address 0x4 - core index']
  #allocation1 [shape = 'u32[72,128]{1,0:T(1,128)}', space=vmem, size = 0x9000, scoped, tag = 'internal scratch']
  %s0 = inlined_call_operand.vmem [shape: bf16[2,1,18,18,4], index: 0, kind: input, shape index: {}]
  %s1 = inlined_call_operand.vmem [shape: bf16[36,32], index: 1, kind: input, shape index: {}]
  %s2 = inlined_call_operand.vmem [shape: bf16[2,1,256,32], index: 2, kind: output, shape index: {0}]
  %s3 = inlined_call_operand.vmem [shape: f32[2,1,2,32], index: 3, kind: output, shape index: {1}]
  %4 = xla_tuple %s2, %s3
  %s5 = sld [smem:[#allocation0]]
  $region49: #{up_conv_forward.2} parent=0
    _
  %s7 = ssub.s32 1, %s5
  %s8 = scalar_select 0, %s7, %s5
  loop: start=0, step=1, limit=4
  $region2: #{up_conv_forward.2} parent=0 // loop_pre_header
    _
  $region3: #{up_conv_forward.2} parent=0 // loop_header
    %s10 = sphi 0, %s14
    %p11 = scmp.ge.s32.totalorder %s10, 4
    %s17 = sphi 0, %s29
    %s18 = sphi 0, %s25
    %s19 = sphi 0, %s17
    %s20 = sphi 0, %s18
    %s21 = sphi 0, %s19
    %s22 = sphi 0, %s20
    %s34 = sphi 0, %s36
    %s37 = sphi 0, %s34
    %s38 = sphi 0, %s37
    %s54 = sphi 0, %s38
    %s58 = sphi 0, %s58
    %s60 = sphi 0, %s58
    %s61 = sphi 0, %s60
    %s75 = sphi 0, %s61
    %s83 = sphi 0, %s85
    %s86 = sphi 0, %s83
    %s87 = sphi 0, %s86
    %s103 = sphi 0, %s87
    %s111 = sphi 0, %s113
    %s114 = sphi 0, %s111
    %s115 = sphi 0, %s114
    %s131 = sphi 0, %s115
  $region4: #{up_conv_forward.2} parent=0 // loop_header_branch
    %13 = sbr.rel (%p11) target = $region8
  $region5: #{up_conv_forward.2} parent=0 // loop_body
    %s15 = ssub.s32 %s10, 1
    %s16 = ssub.s32 %s10, 2
    %s23 = sadd.s32 1, %s18
    %p24 = scmp.ge.s32.totalorder %s23, 1
    %s25 = scalar_select %p24, 0, %s23
    %s26 = sadd.s32 1, %s17
    %s27 = scalar_select %p24, %s26, %s17
    %p28 = scmp.ge.s32.totalorder %s27, 2
    %s29 = scalar_select %p28, 0, %s27
    %s30 = ssub.s32 %s17, %s29
    %s31 = ssub.s32 %s18, %s25
    %s32 = sor.u32 %s30, %s31
    %p33 = scmp.eq.s32.totalorder %s32, 0
    %s35 = sadd.s32 %s34, 1
    %s36 = scalar_select %p33, %s34, %s35
    %p39 = pneg %p33
    %p40 = scmp.eq.s32.totalorder %s10, 1
    %p41 = por %p39, %p40
    %p42 = scmp.ne.s32.totalorder %s34, %s37
    %p43 = scmp.eq.s32.totalorder %s10, 0
    %p44 = por %p42, %p43
    %p45 = scmp.ne.s32.totalorder %s34, %s37
    %p46 = scmp.eq.s32.totalorder %s15, 1
    %p47 = por %p45, %p46
    %p48 = scmp.ne.s32.totalorder %s37, %s38
    %p49 = scmp.eq.s32.totalorder %s15, 0
    %p50 = por %p48, %p49
    %p51 = scmp.ne.s32.totalorder %s37, %s38
    %p52 = scmp.eq.s32.totalorder %s16, 1
    %p53 = por %p51, %p52
    %p55 = scmp.ne.s32.totalorder %s38, %s54
    %p56 = scmp.eq.s32.totalorder %s16, 0
    %p57 = por %p55, %p56
    %s59 = sadd.s32 %s58, 1
    %p62 = scmp.eq.s32.totalorder %s10, 1
    %p63 = scmp.ne.s32.totalorder %s58, %s60
    %p64 = scmp.eq.s32.totalorder %s10, 0
    %p65 = por %p63, %p64
    %p66 = scmp.ne.s32.totalorder %s58, %s60
    %p67 = scmp.eq.s32.totalorder %s15, 1
    %p68 = por %p66, %p67
    %p69 = scmp.ne.s32.totalorder %s60, %s61
    %p70 = scmp.eq.s32.totalorder %s15, 0
    %p71 = por %p69, %p70
    %p72 = scmp.ne.s32.totalorder %s60, %s61
    %p73 = scmp.eq.s32.totalorder %s16, 1
    %p74 = por %p72, %p73
    %p76 = scmp.ne.s32.totalorder %s61, %s75
    %p77 = scmp.eq.s32.totalorder %s16, 0
    %p78 = por %p76, %p77
    %s79 = ssub.s32 %s17, %s29
    %s80 = ssub.s32 %s18, %s25
    %s81 = sor.u32 %s79, %s80
    %p82 = scmp.eq.s32.totalorder %s81, 0
    %s84 = sadd.s32 %s83, 1
    %s85 = scalar_select %p82, %s83, %s84
    %p88 = pneg %p82
    %p89 = scmp.eq.s32.totalorder %s10, 1
    %p90 = por %p88, %p89
    %p91 = scmp.ne.s32.totalorder %s83, %s86
    %p92 = scmp.eq.s32.totalorder %s10, 0
    %p93 = por %p91, %p92
    %p94 = scmp.ne.s32.totalorder %s83, %s86
    %p95 = scmp.eq.s32.totalorder %s15, 1
    %p96 = por %p94, %p95
    %p97 = scmp.ne.s32.totalorder %s86, %s87
    %p98 = scmp.eq.s32.totalorder %s15, 0
    %p99 = por %p97, %p98
    %p100 = scmp.ne.s32.totalorder %s86, %s87
    %p101 = scmp.eq.s32.totalorder %s16, 1
    %p102 = por %p100, %p101
    %p104 = scmp.ne.s32.totalorder %s87, %s103
    %p105 = scmp.eq.s32.totalorder %s16, 0
    %p106 = por %p104, %p105
    %s107 = ssub.s32 %s17, %s29
    %s108 = ssub.s32 %s18, %s25
    %s109 = sor.u32 %s107, %s108
    %p110 = scmp.eq.s32.totalorder %s109, 0
    %s112 = sadd.s32 %s111, 1
    %s113 = scalar_select %p110, %s111, %s112
    %p116 = pneg %p110
    %p117 = scmp.eq.s32.totalorder %s10, 1
    %p118 = por %p116, %p117
    %p119 = scmp.ne.s32.totalorder %s111, %s114
    %p120 = scmp.eq.s32.totalorder %s10, 0
    %p121 = por %p119, %p120
    %p122 = scmp.ne.s32.totalorder %s111, %s114
    %p123 = scmp.eq.s32.totalorder %s15, 1
    %p124 = por %p122, %p123
    %p125 = scmp.ne.s32.totalorder %s114, %s115
    %p126 = scmp.eq.s32.totalorder %s15, 0
    %p127 = por %p125, %p126
    %p128 = scmp.ne.s32.totalorder %s114, %s115
    %p129 = scmp.eq.s32.totalorder %s16, 1
    %p130 = por %p128, %p129
    %p132 = scmp.ne.s32.totalorder %s115, %s131
    %p133 = scmp.eq.s32.totalorder %s16, 0
    %p134 = por %p132, %p133
    %p135 = scmp.le.s32.totalorder 1, %s10
    %p136 = scmp.lt.s32.totalorder %s10, 3
    %p137 = pnand %p135, %p136
    %p138 = pneg %p137
    // Predicated region
    $region9: #{up_conv_forward.2} parent=5 // pred_check
      _
    $region10: #{up_conv_forward.2} parent=5 // pred_check_branch
      %140 = sbr.rel (%p137) target = $region12
    $region11: #{up_conv_forward.2} parent=5 // pred_region
      %s141 = ssub.s32 %s10, 1
      // Predicated region
      $region13: #{up_conv_forward.2} parent=11 // pred_check
        %p142 = pneg %p71
      $region14: #{up_conv_forward.2} parent=11 // pred_check_branch
        %144 = sbr.rel (%p142) target = $region16
      $region15: #{up_conv_forward.2} parent=11 // pred_region
        _
      $region16: #{up_conv_forward.2} parent=11 // pred_fallthru
        _
    $region12: #{up_conv_forward.2} parent=5 // pred_fallthru
      _
    %p145 = scmp.lt.s32.totalorder %s10, 2
    // Predicated region
    $region17: #{up_conv_forward.2} parent=5 // pred_check
      %p146 = pneg %p145
    $region18: #{up_conv_forward.2} parent=5 // pred_check_branch
      %148 = sbr.rel (%p146) target = $region20
    $region19: #{up_conv_forward.2} parent=5 // pred_region
      // Predicated region
      $region21: #{up_conv_forward.2} parent=19 // pred_check
        %p149 = pneg %p44
      $region22: #{up_conv_forward.2} parent=19 // pred_check_branch
        %151 = sbr.rel (%p149) target = $region24
      $region23: #{up_conv_forward.2} parent=19 // pred_region
        %p152 = scmp.lt.s32.totalorder %s17, 1
        %s153 = scalar_select %p152, %s17, 1
        %p154 = scmp.lt.s32.totalorder %s18, 0
        %s155 = scalar_select %p154, %s18, 0
        %s156 = smul.addr %s155, 54
        %s157 = smul.addr %s153, 54
        %s158 = sadd.s32 %s156, %s157
        %s159 = smul.addr %s158, 4
        %s160 = scalar_lea.vmem %s0, %s159
      $region24: #{up_conv_forward.2} parent=19 // pred_fallthru
        _
    $region20: #{up_conv_forward.2} parent=5 // pred_fallthru
      _
    %p161 = scmp.le.s32.totalorder 1, %s10
    %p162 = scmp.lt.s32.totalorder %s10, 3
    %p163 = pnand %p161, %p162
    %p164 = pneg %p163
    // Predicated region
    $region25: #{up_conv_forward.2} parent=5 // pred_check
      _
    $region26: #{up_conv_forward.2} parent=5 // pred_check_branch
      %166 = sbr.rel (%p163) target = $region28
    $region27: #{up_conv_forward.2} parent=5 // pred_region
      %s167 = ssub.s32 %s10, 1
      %p168 = scmp.lt.s32.totalorder %s19, 1
      %s169 = scalar_select %p168, %s19, 1
      %p170 = scmp.lt.s32.totalorder %s20, 0
      %s171 = scalar_select %p170, %s20, 0
      %s172 = smul.addr %s171, 54
      %s173 = smul.addr %s169, 54
      %s174 = sadd.s32 %s172, %s173
      %s175 = smul.addr %s174, 4
      %s176 = scalar_lea.vmem %s0, %s175
      %p177 = pneg %p50
      %p178 = pneg %p47
      %p179 = pneg %p71
      %p180 = pneg %p68
      %p181 = pneg %p99
      %p182 = pneg %p96
      %p183 = scmp.lt.s32.totalorder %s19, 1
      %s184 = scalar_select %p183, %s19, 1
      %p185 = scmp.lt.s32.totalorder %s20, 0
      %s186 = scalar_select %p185, %s20, 0
      %s187 = smul.addr %s186, 32
      %s188 = smul.addr %s184, 32
      %s189 = sadd.s32 %s187, %s188
      %s190 = smul.addr %s189, 4
      %s191 = scalar_lea.vmem %s2, %s190
      %p192 = pneg %p127
      %p193 = pneg %p124
      %p194 = scmp.lt.s32.totalorder %s19, 1
      %s195 = scalar_select %p194, %s19, 1
      %p196 = scmp.lt.s32.totalorder %s20, 0
      %s197 = scalar_select %p196, %s20, 0
      %s198 = sadd.s32 %s197, %s195
      %s199 = smul.addr %s198, 2
      %s200 = scalar_lea.vmem %s3, %s199
      %p201 = scmp.lt.s32.totalorder %s19, 1
      %s202 = scalar_select %p201, %s19, 1
      %p203 = scmp.lt.s32.totalorder %s20, 0
      %s204 = scalar_select %p203, %s20, 0
      %s205 = smul.addr %s204, 54
      %s206 = smul.addr %s202, 54
      %s207 = sadd.s32 %s205, %s206
      %s208 = smul.addr %s207, 4
      %s209 = scalar_lea.vmem %s0, %s208
      %p210 = scmp.lt.s32.totalorder %s19, 1
      %s211 = scalar_select %p210, %s19, 1
      %p212 = scmp.lt.s32.totalorder %s20, 0
      %s213 = scalar_select %p212, %s20, 0
      %s214 = smul.addr %s213, 32
      %s215 = smul.addr %s211, 32
      %s216 = sadd.s32 %s214, %s215
      %s217 = smul.addr %s216, 4
      %s218 = scalar_lea.vmem %s2, %s217
      %p219 = scmp.lt.s32.totalorder %s19, 1
      %s220 = scalar_select %p219, %s19, 1
      %p221 = scmp.lt.s32.totalorder %s20, 0
      %s222 = scalar_select %p221, %s20, 0
      %s223 = sadd.s32 %s222, %s220
      %s224 = smul.addr %s223, 2
      %s225 = scalar_lea.vmem %s3, %s224
      %v227 = vld [vmem:[%s209] sm:$0xf]
      %v228 = vld [vmem:[%s209 + $0x4] sm:$0xf]
      %v229 = vld [vmem:[%s209 + $0x8] sm:$0x1]
      %v230 = vld [vmem:[%s209 + $0xc] sm:$0xf]
      %v231 = vld [vmem:[%s209 + $0x10] sm:$0xf]
      %v232 = vld [vmem:[%s209 + $0x14] sm:$0x1]
      %v233 = vld [vmem:[%s209 + $0x18] sm:$0xf]
      %v234 = vld [vmem:[%s209 + $0x1c] sm:$0xf]
      %v235 = vld [vmem:[%s209 + $0x20] sm:$0x1]
      %v236 = vld [vmem:[%s209 + $0x24] sm:$0xf]
      %v237 = vld [vmem:[%s209 + $0x28] sm:$0xf]
      %v238 = vld [vmem:[%s209 + $0x2c] sm:$0x1]
      %v239 = vld [vmem:[%s209 + $0x30] sm:$0xf]
      %v240 = vld [vmem:[%s209 + $0x34] sm:$0xf]
      %v241 = vld [vmem:[%s209 + $0x38] sm:$0x1]
      %v242 = vld [vmem:[%s209 + $0x3c] sm:$0xf]
      %v243 = vld [vmem:[%s209 + $0x40] sm:$0xf]
      %v244 = vld [vmem:[%s209 + $0x44] sm:$0x1]
      %v245 = vld [vmem:[%s209 + $0x48] sm:$0xf]
      %v246 = vld [vmem:[%s209 + $0x4c] sm:$0xf]
      %v247 = vld [vmem:[%s209 + $0x50] sm:$0x1]
      %v248 = vld [vmem:[%s209 + $0x54] sm:$0xf]
      %v249 = vld [vmem:[%s209 + $0x58] sm:$0xf]
      %v250 = vld [vmem:[%s209 + $0x5c] sm:$0x1]
      %v251 = vld [vmem:[%s209 + $0x60] sm:$0xf]
      %v252 = vld [vmem:[%s209 + $0x64] sm:$0xf]
      %v253 = vld [vmem:[%s209 + $0x68] sm:$0x1]
      %v254 = vld [vmem:[%s209 + $0x6c] sm:$0xf]
      %v255 = vld [vmem:[%s209 + $0x70] sm:$0xf]
      %v256 = vld [vmem:[%s209 + $0x74] sm:$0x1]
      %v257 = vld [vmem:[%s209 + $0x78] sm:$0xf]
      %v258 = vld [vmem:[%s209 + $0x7c] sm:$0xf]
      %v259 = vld [vmem:[%s209 + $0x80] sm:$0x1]
      %v260 = vld [vmem:[%s209 + $0x84] sm:$0xf]
      %v261 = vld [vmem:[%s209 + $0x88] sm:$0xf]
      %v262 = vld [vmem:[%s209 + $0x8c] sm:$0x1]
      %v263 = vld [vmem:[%s209 + $0x90] sm:$0xf]
      %v264 = vld [vmem:[%s209 + $0x94] sm:$0xf]
      %v265 = vld [vmem:[%s209 + $0x98] sm:$0x1]
      %v266 = vld [vmem:[%s209 + $0x9c] sm:$0xf]
      %v267 = vld [vmem:[%s209 + $0xa0] sm:$0xf]
      %v268 = vld [vmem:[%s209 + $0xa4] sm:$0x1]
      %v269 = vld [vmem:[%s209 + $0xa8] sm:$0xf]
      %v270 = vld [vmem:[%s209 + $0xac] sm:$0xf]
      %v271 = vld [vmem:[%s209 + $0xb0] sm:$0x1]
      %v272 = vld [vmem:[%s209 + $0xb4] sm:$0xf]
      %v273 = vld [vmem:[%s209 + $0xb8] sm:$0xf]
      %v274 = vld [vmem:[%s209 + $0xbc] sm:$0x1]
      %v275 = vld [vmem:[%s209 + $0xc0] sm:$0xf]
      %v276 = vld [vmem:[%s209 + $0xc4] sm:$0xf]
      %v277 = vld [vmem:[%s209 + $0xc8] sm:$0x1]
      %v278 = vld [vmem:[%s209 + $0xcc] sm:$0xf]
      %v279 = vld [vmem:[%s209 + $0xd0] sm:$0xf]
      %v280 = vld [vmem:[%s209 + $0xd4] sm:$0x1]
      %vm281 = vsmask.f32 3328
      %vm282 = vsmask.f32 7440
      %vm283 = vmor %vm281, %vm282
      %v285 = vshrl.u32 %v227, 16
      %v287 = vrot.slane %v285, 4
      %v288 = vshll.u32 %v227, 16
      %v290 = vrot.slane %v288, 5
      %v291 = vor.u32 %v287, %v290
      %v292 = vrot.slane %v291, 4
      %v294 = vshll.u32 %v228, 16
      %v296 = vrot.slane %v294, 5
      %v297 = vsel %vm283, %v292, %v296
      %v298 = vshrl.u32 %v228, 16
      %v300 = vrot.slane %v298, 4
      %v301 = vor.u32 %v300, %v296
      %v302 = vrot.slane %v301, 4
      %v304 = vshll.u32 %v229, 16
      %v306 = vrot.slane %v304, 5
      %v307 = vsel %vm283, %v302, %v306
      %v309 = vshrl.u32 %v230, 16
      %v311 = vrot.slane %v309, 4
      %v312 = vshll.u32 %v230, 16
      %v314 = vrot.slane %v312, 5
      %v315 = vor.u32 %v311, %v314
      %v316 = vrot.slane %v315, 4
      %v318 = vshll.u32 %v231, 16
      %v320 = vrot.slane %v318, 5
      %v321 = vsel %vm283, %v316, %v320
      %v322 = vshrl.u32 %v231, 16
      %v324 = vrot.slane %v322, 4
      %v325 = vor.u32 %v324, %v320
      %v326 = vrot.slane %v325, 4
      %v328 = vshll.u32 %v232, 16
      %v330 = vrot.slane %v328, 5
      %v331 = vsel %vm283, %v326, %v330
      %v333 = vshrl.u32 %v233, 16
      %v335 = vrot.slane %v333, 4
      %v336 = vshll.u32 %v233, 16
      %v338 = vrot.slane %v336, 5
      %v339 = vor.u32 %v335, %v338
      %v340 = vrot.slane %v339, 4
      %v342 = vshll.u32 %v234, 16
      %v344 = vrot.slane %v342, 5
      %v345 = vsel %vm283, %v340, %v344
      %v346 = vshrl.u32 %v234, 16
      %v348 = vrot.slane %v346, 4
      %v349 = vor.u32 %v348, %v344
      %v350 = vrot.slane %v349, 4
      %v352 = vshll.u32 %v235, 16
      %v354 = vrot.slane %v352, 5
      %v355 = vsel %vm283, %v350, %v354
      %v357 = vshrl.u32 %v236, 16
      %v359 = vrot.slane %v357, 4
      %v360 = vshll.u32 %v236, 16
      %v362 = vrot.slane %v360, 5
      %v363 = vor.u32 %v359, %v362
      %v364 = vrot.slane %v363, 4
      %v366 = vshll.u32 %v237, 16
      %v368 = vrot.slane %v366, 5
      %v369 = vsel %vm283, %v364, %v368
      %v370 = vshrl.u32 %v237, 16
      %v372 = vrot.slane %v370, 4
      %v373 = vor.u32 %v372, %v368
      %v374 = vrot.slane %v373, 4
      %v376 = vshll.u32 %v238, 16
      %v378 = vrot.slane %v376, 5
      %v379 = vsel %vm283, %v374, %v378
      %v381 = vshrl.u32 %v239, 16
      %v383 = vrot.slane %v381, 4
      %v384 = vshll.u32 %v239, 16
      %v386 = vrot.slane %v384, 5
      %v387 = vor.u32 %v383, %v386
      %v388 = vrot.slane %v387, 4
      %v390 = vshll.u32 %v240, 16
      %v392 = vrot.slane %v390, 5
      %v393 = vsel %vm283, %v388, %v392
      %v394 = vshrl.u32 %v240, 16
      %v396 = vrot.slane %v394, 4
      %v397 = vor.u32 %v396, %v392
      %v398 = vrot.slane %v397, 4
      %v400 = vshll.u32 %v241, 16
      %v402 = vrot.slane %v400, 5
      %v403 = vsel %vm283, %v398, %v402
      %v405 = vshrl.u32 %v242, 16
      %v407 = vrot.slane %v405, 4
      %v408 = vshll.u32 %v242, 16
      %v410 = vrot.slane %v408, 5
      %v411 = vor.u32 %v407, %v410
      %v412 = vrot.slane %v411, 4
      %v414 = vshll.u32 %v243, 16
      %v416 = vrot.slane %v414, 5
      %v417 = vsel %vm283, %v412, %v416
      %v418 = vshrl.u32 %v243, 16
      %v420 = vrot.slane %v418, 4
      %v421 = vor.u32 %v420, %v416
      %v422 = vrot.slane %v421, 4
      %v424 = vshll.u32 %v244, 16
      %v426 = vrot.slane %v424, 5
      %v427 = vsel %vm283, %v422, %v426
      %v429 = vshrl.u32 %v245, 16
      %v431 = vrot.slane %v429, 4
      %v432 = vshll.u32 %v245, 16
      %v434 = vrot.slane %v432, 5
      %v435 = vor.u32 %v431, %v434
      %v436 = vrot.slane %v435, 4
      %v438 = vshll.u32 %v246, 16
      %v440 = vrot.slane %v438, 5
      %v441 = vsel %vm283, %v436, %v440
      %v442 = vshrl.u32 %v246, 16
      %v444 = vrot.slane %v442, 4
      %v445 = vor.u32 %v444, %v440
      %v446 = vrot.slane %v445, 4
      %v448 = vshll.u32 %v247, 16
      %v450 = vrot.slane %v448, 5
      %v451 = vsel %vm283, %v446, %v450
      %v453 = vshrl.u32 %v248, 16
      %v455 = vrot.slane %v453, 4
      %v456 = vshll.u32 %v248, 16
      %v458 = vrot.slane %v456, 5
      %v459 = vor.u32 %v455, %v458
      %v460 = vrot.slane %v459, 4
      %v462 = vshll.u32 %v249, 16
      %v464 = vrot.slane %v462, 5
      %v465 = vsel %vm283, %v460, %v464
      %v466 = vshrl.u32 %v249, 16
      %v468 = vrot.slane %v466, 4
      %v469 = vor.u32 %v468, %v464
      %v470 = vrot.slane %v469, 4
      %v472 = vshll.u32 %v250, 16
      %v474 = vrot.slane %v472, 5
      %v475 = vsel %vm283, %v470, %v474
      %v477 = vshrl.u32 %v251, 16
      %v479 = vrot.slane %v477, 4
      %v480 = vshll.u32 %v251, 16
      %v482 = vrot.slane %v480, 5
      %v483 = vor.u32 %v479, %v482
      %v484 = vrot.slane %v483, 4
      %v486 = vshll.u32 %v252, 16
      %v488 = vrot.slane %v486, 5
      %v489 = vsel %vm283, %v484, %v488
      %v490 = vshrl.u32 %v252, 16
      %v492 = vrot.slane %v490, 4
      %v493 = vor.u32 %v492, %v488
      %v494 = vrot.slane %v493, 4
      %v496 = vshll.u32 %v253, 16
      %v498 = vrot.slane %v496, 5
      %v499 = vsel %vm283, %v494, %v498
      %v501 = vshrl.u32 %v254, 16
      %v503 = vrot.slane %v501, 4
      %v504 = vshll.u32 %v254, 16
      %v506 = vrot.slane %v504, 5
      %v507 = vor.u32 %v503, %v506
      %v508 = vrot.slane %v507, 4
      %v510 = vshll.u32 %v255, 16
      %v512 = vrot.slane %v510, 5
      %v513 = vsel %vm283, %v508, %v512
      %v514 = vshrl.u32 %v255, 16
      %v516 = vrot.slane %v514, 4
      %v517 = vor.u32 %v516, %v512
      %v518 = vrot.slane %v517, 4
      %v520 = vshll.u32 %v256, 16
      %v522 = vrot.slane %v520, 5
      %v523 = vsel %vm283, %v518, %v522
      %v525 = vshrl.u32 %v257, 16
      %v527 = vrot.slane %v525, 4
      %v528 = vshll.u32 %v257, 16
      %v530 = vrot.slane %v528, 5
      %v531 = vor.u32 %v527, %v530
      %v532 = vrot.slane %v531, 4
      %v534 = vshll.u32 %v258, 16
      %v536 = vrot.slane %v534, 5
      %v537 = vsel %vm283, %v532, %v536
      %v538 = vshrl.u32 %v258, 16
      %v540 = vrot.slane %v538, 4
      %v541 = vor.u32 %v540, %v536
      %v542 = vrot.slane %v541, 4
      %v544 = vshll.u32 %v259, 16
      %v546 = vrot.slane %v544, 5
      %v547 = vsel %vm283, %v542, %v546
      %v549 = vshrl.u32 %v260, 16
      %v551 = vrot.slane %v549, 4
      %v552 = vshll.u32 %v260, 16
      %v554 = vrot.slane %v552, 5
      %v555 = vor.u32 %v551, %v554
      %v556 = vrot.slane %v555, 4
      %v558 = vshll.u32 %v261, 16
      %v560 = vrot.slane %v558, 5
      %v561 = vsel %vm283, %v556, %v560
      %v562 = vshrl.u32 %v261, 16
      %v564 = vrot.slane %v562, 4
      %v565 = vor.u32 %v564, %v560
      %v566 = vrot.slane %v565, 4
      %v568 = vshll.u32 %v262, 16
      %v570 = vrot.slane %v568, 5
      %v571 = vsel %vm283, %v566, %v570
      %v573 = vshrl.u32 %v263, 16
      %v575 = vrot.slane %v573, 4
      %v576 = vshll.u32 %v263, 16
      %v578 = vrot.slane %v576, 5
      %v579 = vor.u32 %v575, %v578
      %v580 = vrot.slane %v579, 4
      %v582 = vshll.u32 %v264, 16
      %v584 = vrot.slane %v582, 5
      %v585 = vsel %vm283, %v580, %v584
      %v586 = vshrl.u32 %v264, 16
      %v588 = vrot.slane %v586, 4
      %v589 = vor.u32 %v588, %v584
      %v590 = vrot.slane %v589, 4
      %v592 = vshll.u32 %v265, 16
      %v594 = vrot.slane %v592, 5
      %v595 = vsel %vm283, %v590, %v594
      %v597 = vshrl.u32 %v266, 16
      %v599 = vrot.slane %v597, 4
      %v600 = vshll.u32 %v266, 16
      %v602 = vrot.slane %v600, 5
      %v603 = vor.u32 %v599, %v602
      %v604 = vrot.slane %v603, 4
      %v606 = vshll.u32 %v267, 16
      %v608 = vrot.slane %v606, 5
      %v609 = vsel %vm283, %v604, %v608
      %v610 = vshrl.u32 %v267, 16
      %v612 = vrot.slane %v610, 4
      %v613 = vor.u32 %v612, %v608
      %v614 = vrot.slane %v613, 4
      %v616 = vshll.u32 %v268, 16
      %v618 = vrot.slane %v616, 5
      %v619 = vsel %vm283, %v614, %v618
      %v621 = vshrl.u32 %v269, 16
      %v623 = vrot.slane %v621, 4
      %v624 = vshll.u32 %v269, 16
      %v626 = vrot.slane %v624, 5
      %v627 = vor.u32 %v623, %v626
      %v628 = vrot.slane %v627, 4
      %v630 = vshll.u32 %v270, 16
      %v632 = vrot.slane %v630, 5
      %v633 = vsel %vm283, %v628, %v632
      %v634 = vshrl.u32 %v270, 16
      %v636 = vrot.slane %v634, 4
      %v637 = vor.u32 %v636, %v632
      %v638 = vrot.slane %v637, 4
      %v640 = vshll.u32 %v271, 16
      %v642 = vrot.slane %v640, 5
      %v643 = vsel %vm283, %v638, %v642
      %v645 = vshrl.u32 %v272, 16
      %v647 = vrot.slane %v645, 4
      %v648 = vshll.u32 %v272, 16
      %v650 = vrot.slane %v648, 5
      %v651 = vor.u32 %v647, %v650
      %v652 = vrot.slane %v651, 4
      %v654 = vshll.u32 %v273, 16
      %v656 = vrot.slane %v654, 5
      %v657 = vsel %vm283, %v652, %v656
      %v658 = vshrl.u32 %v273, 16
      %v660 = vrot.slane %v658, 4
      %v661 = vor.u32 %v660, %v656
      %v662 = vrot.slane %v661, 4
      %v664 = vshll.u32 %v274, 16
      %v666 = vrot.slane %v664, 5
      %v667 = vsel %vm283, %v662, %v666
      %vm716 = vcmask 1042432
      %vm717 = vcmask 1046532
      %vm718 = vmor %vm716, %vm717
      %v719 = vrot.slane %v227, 5
      %v720 = vrot.slane %v719, 4
      %v721 = vrot.slane %v228, 5
      %v722 = vsel %vm718, %v720, %v721
      %v723 = vrot.slane %v721, 4
      %v724 = vrot.slane %v229, 5
      %v725 = vsel %vm718, %v723, %v724
      %v726 = vrot.slane %v230, 5
      %v727 = vrot.slane %v726, 4
      %v728 = vrot.slane %v231, 5
      %v729 = vsel %vm718, %v727, %v728
      %v730 = vrot.slane %v728, 4
      %v731 = vrot.slane %v232, 5
      %v732 = vsel %vm718, %v730, %v731
      %v733 = vrot.slane %v233, 5
      %v734 = vrot.slane %v733, 4
      %v735 = vrot.slane %v234, 5
      %v736 = vsel %vm718, %v734, %v735
      %v737 = vrot.slane %v735, 4
      %v738 = vrot.slane %v235, 5
      %v739 = vsel %vm718, %v737, %v738
      %v740 = vrot.slane %v236, 5
      %v741 = vrot.slane %v740, 4
      %v742 = vrot.slane %v237, 5
      %v743 = vsel %vm718, %v741, %v742
      %v744 = vrot.slane %v742, 4
      %v745 = vrot.slane %v238, 5
      %v746 = vsel %vm718, %v744, %v745
      %v747 = vrot.slane %v239, 5
      %v748 = vrot.slane %v747, 4
      %v749 = vrot.slane %v240, 5
      %v750 = vsel %vm718, %v748, %v749
      %v751 = vrot.slane %v749, 4
      %v752 = vrot.slane %v241, 5
      %v753 = vsel %vm718, %v751, %v752
      %v754 = vrot.slane %v242, 5
      %v755 = vrot.slane %v754, 4
      %v756 = vrot.slane %v243, 5
      %v757 = vsel %vm718, %v755, %v756
      %v758 = vrot.slane %v756, 4
      %v759 = vrot.slane %v244, 5
      %v760 = vsel %vm718, %v758, %v759
      %v761 = vrot.slane %v245, 5
      %v762 = vrot.slane %v761, 4
      %v763 = vrot.slane %v246, 5
      %v764 = vsel %vm718, %v762, %v763
      %v765 = vrot.slane %v763, 4
      %v766 = vrot.slane %v247, 5
      %v767 = vsel %vm718, %v765, %v766
      %v768 = vrot.slane %v248, 5
      %v769 = vrot.slane %v768, 4
      %v770 = vrot.slane %v249, 5
      %v771 = vsel %vm718, %v769, %v770
      %v772 = vrot.slane %v770, 4
      %v773 = vrot.slane %v250, 5
      %v774 = vsel %vm718, %v772, %v773
      %v775 = vrot.slane %v251, 5
      %v776 = vrot.slane %v775, 4
      %v777 = vrot.slane %v252, 5
      %v778 = vsel %vm718, %v776, %v777
      %v779 = vrot.slane %v777, 4
      %v780 = vrot.slane %v253, 5
      %v781 = vsel %vm718, %v779, %v780
      %v782 = vrot.slane %v254, 5
      %v783 = vrot.slane %v782, 4
      %v784 = vrot.slane %v255, 5
      %v785 = vsel %vm718, %v783, %v784
      %v786 = vrot.slane %v784, 4
      %v787 = vrot.slane %v256, 5
      %v788 = vsel %vm718, %v786, %v787
      %v789 = vrot.slane %v257, 5
      %v790 = vrot.slane %v789, 4
      %v791 = vrot.slane %v258, 5
      %v792 = vsel %vm718, %v790, %v791
      %v793 = vrot.slane %v791, 4
      %v794 = vrot.slane %v259, 5
      %v795 = vsel %vm718, %v793, %v794
      %v796 = vrot.slane %v260, 5
      %v797 = vrot.slane %v796, 4
      %v798 = vrot.slane %v261, 5
      %v799 = vsel %vm718, %v797, %v798
      %v800 = vrot.slane %v798, 4
      %v801 = vrot.slane %v262, 5
      %v802 = vsel %vm718, %v800, %v801
      %v803 = vrot.slane %v263, 5
      %v804 = vrot.slane %v803, 4
      %v805 = vrot.slane %v264, 5
      %v806 = vsel %vm718, %v804, %v805
      %v807 = vrot.slane %v805, 4
      %v808 = vrot.slane %v265, 5
      %v809 = vsel %vm718, %v807, %v808
      %v810 = vrot.slane %v266, 5
      %v811 = vrot.slane %v810, 4
      %v812 = vrot.slane %v267, 5
      %v813 = vsel %vm718, %v811, %v812
      %v814 = vrot.slane %v812, 4
      %v815 = vrot.slane %v268, 5
      %v816 = vsel %vm718, %v814, %v815
      %v817 = vrot.slane %v269, 5
      %v818 = vrot.slane %v817, 4
      %v819 = vrot.slane %v270, 5
      %v820 = vsel %vm718, %v818, %v819
      %v821 = vrot.slane %v819, 4
      %v822 = vrot.slane %v271, 5
      %v823 = vsel %vm718, %v821, %v822
      %v824 = vrot.slane %v272, 5
      %v825 = vrot.slane %v824, 4
      %v826 = vrot.slane %v273, 5
      %v827 = vsel %vm718, %v825, %v826
      %v828 = vrot.slane %v826, 4
      %v829 = vrot.slane %v274, 5
      %v830 = vsel %vm718, %v828, %v829
      %v832 = vshrl.u32 %v275, 16
      %v834 = vrot.slane %v832, 4
      %v835 = vshll.u32 %v275, 16
      %v837 = vrot.slane %v835, 5
      %v838 = vor.u32 %v834, %v837
      %v839 = vrot.slane %v838, 4
      %v841 = vshll.u32 %v276, 16
      %v843 = vrot.slane %v841, 5
      %v844 = vsel %vm283, %v839, %v843
      %v845 = vshrl.u32 %v276, 16
      %v847 = vrot.slane %v845, 4
      %v848 = vor.u32 %v847, %v843
      %v849 = vrot.slane %v848, 4
      %v851 = vshll.u32 %v277, 16
      %v853 = vrot.slane %v851, 5
      %v854 = vsel %vm283, %v849, %v853
      %v858 = vrot.slane %v275, 5
      %v859 = vrot.slane %v858, 4
      %v860 = vrot.slane %v276, 5
      %v861 = vsel %vm718, %v859, %v860
      %v862 = vrot.slane %v860, 4
      %v863 = vrot.slane %v277, 5
      %v864 = vsel %vm718, %v862, %v863
      %v866 = vshrl.u32 %v278, 16
      %v868 = vrot.slane %v866, 4
      %v869 = vshll.u32 %v278, 16
      %v871 = vrot.slane %v869, 5
      %v872 = vor.u32 %v868, %v871
      %v873 = vrot.slane %v872, 4
      %v875 = vshll.u32 %v279, 16
      %v877 = vrot.slane %v875, 5
      %v878 = vsel %vm283, %v873, %v877
      %v879 = vshrl.u32 %v279, 16
      %v881 = vrot.slane %v879, 4
      %v882 = vor.u32 %v881, %v877
      %v883 = vrot.slane %v882, 4
      %v885 = vshll.u32 %v280, 16
      %v887 = vrot.slane %v885, 5
      %v888 = vsel %vm283, %v883, %v887
      %v892 = vrot.slane %v278, 5
      %v893 = vrot.slane %v892, 4
      %v894 = vrot.slane %v279, 5
      %v895 = vsel %vm718, %v893, %v894
      %v896 = vrot.slane %v894, 4
      %v897 = vrot.slane %v280, 5
      %v898 = vsel %vm718, %v896, %v897
      %v899 = vunpack.c.l.b16 %v227
      %v900 = vunpack.c.l.b16 %v228
      %v901 = vunpack.c.l.b16 %v230
      %v902 = vunpack.c.l.b16 %v231
      %v903 = vunpack.c.l.b16 %v233
      %v904 = vunpack.c.l.b16 %v234
      %v905 = vunpack.c.l.b16 %v236
      %v906 = vunpack.c.l.b16 %v237
      %v907 = vunpack.c.l.b16 %v239
      %v908 = vunpack.c.l.b16 %v240
      %v909 = vunpack.c.l.b16 %v242
      %v910 = vunpack.c.l.b16 %v243
      %v911 = vunpack.c.l.b16 %v245
      %v912 = vunpack.c.l.b16 %v246
      %v913 = vunpack.c.l.b16 %v248
      %v914 = vunpack.c.l.b16 %v249
      %v915 = vunpack.c.l.b16 %v251
      %v916 = vunpack.c.l.b16 %v252
      %v917 = vunpack.c.l.b16 %v254
      %v918 = vunpack.c.l.b16 %v255
      %v919 = vunpack.c.l.b16 %v257
      %v920 = vunpack.c.l.b16 %v258
      %v921 = vunpack.c.l.b16 %v260
      %v922 = vunpack.c.l.b16 %v261
      %v923 = vunpack.c.l.b16 %v263
      %v924 = vunpack.c.l.b16 %v264
      %v925 = vunpack.c.l.b16 %v266
      %v926 = vunpack.c.l.b16 %v267
      %v927 = vunpack.c.l.b16 %v269
      %v928 = vunpack.c.l.b16 %v270
      %v929 = vunpack.c.l.b16 %v272
      %v930 = vunpack.c.l.b16 %v273
      %v931 = vpack.c.b16 %v900, %v899
      %v932 = vpack.c.b16 %v902, %v901
      %v933 = vpack.c.b16 %v904, %v903
      %v934 = vpack.c.b16 %v906, %v905
      %v935 = vpack.c.b16 %v908, %v907
      %v936 = vpack.c.b16 %v910, %v909
      %v937 = vpack.c.b16 %v912, %v911
      %v938 = vpack.c.b16 %v914, %v913
      %v939 = vpack.c.b16 %v916, %v915
      %v940 = vpack.c.b16 %v918, %v917
      %v941 = vpack.c.b16 %v920, %v919
      %v942 = vpack.c.b16 %v922, %v921
      %v943 = vpack.c.b16 %v924, %v923
      %v944 = vpack.c.b16 %v926, %v925
      %v945 = vpack.c.b16 %v928, %v927
      %v946 = vpack.c.b16 %v930, %v929
      %v947 = vunpack.c.l.b16 %v297
      %v948 = vunpack.c.l.b16 %v307
      %v949 = vunpack.c.l.b16 %v321
      %v950 = vunpack.c.l.b16 %v331
      %v951 = vunpack.c.l.b16 %v345
      %v952 = vunpack.c.l.b16 %v355
      %v953 = vunpack.c.l.b16 %v369
      %v954 = vunpack.c.l.b16 %v379
      %v955 = vunpack.c.l.b16 %v393
      %v956 = vunpack.c.l.b16 %v403
      %v957 = vunpack.c.l.b16 %v417
      %v958 = vunpack.c.l.b16 %v427
      %v959 = vunpack.c.l.b16 %v441
      %v960 = vunpack.c.l.b16 %v451
      %v961 = vunpack.c.l.b16 %v465
      %v962 = vunpack.c.l.b16 %v475
      %v963 = vunpack.c.l.b16 %v489
      %v964 = vunpack.c.l.b16 %v499
      %v965 = vunpack.c.l.b16 %v513
      %v966 = vunpack.c.l.b16 %v523
      %v967 = vunpack.c.l.b16 %v537
      %v968 = vunpack.c.l.b16 %v547
      %v969 = vunpack.c.l.b16 %v561
      %v970 = vunpack.c.l.b16 %v571
      %v971 = vunpack.c.l.b16 %v585
      %v972 = vunpack.c.l.b16 %v595
      %v973 = vunpack.c.l.b16 %v609
      %v974 = vunpack.c.l.b16 %v619
      %v975 = vunpack.c.l.b16 %v633
      %v976 = vunpack.c.l.b16 %v643
      %v977 = vunpack.c.l.b16 %v657
      %v978 = vunpack.c.l.b16 %v667
      %v979 = vpack.c.b16 %v948, %v947
      %v980 = vpack.c.b16 %v950, %v949
      %v981 = vpack.c.b16 %v952, %v951
      %v982 = vpack.c.b16 %v954, %v953
      %v983 = vpack.c.b16 %v956, %v955
      %v984 = vpack.c.b16 %v958, %v957
      %v985 = vpack.c.b16 %v960, %v959
      %v986 = vpack.c.b16 %v962, %v961
      %v987 = vpack.c.b16 %v964, %v963
      %v988 = vpack.c.b16 %v966, %v965
      %v989 = vpack.c.b16 %v968, %v967
      %v990 = vpack.c.b16 %v970, %v969
      %v991 = vpack.c.b16 %v972, %v971
      %v992 = vpack.c.b16 %v974, %v973
      %v993 = vpack.c.b16 %v976, %v975
      %v994 = vpack.c.b16 %v978, %v977
      %995 = vrot.lane.b32.xlu0 %v979, 4
      %v996 = vpop.permute.xlu0 %995
      %997 = vrot.lane.b32.xlu0 %v980, 4
      %v998 = vpop.permute.xlu0 %997
      %999 = vrot.lane.b32.xlu0 %v981, 4
      %v1000 = vpop.permute.xlu0 %999
      %1001 = vrot.lane.b32.xlu0 %v982, 4
      %v1002 = vpop.permute.xlu0 %1001
      %1003 = vrot.lane.b32.xlu0 %v983, 4
      %v1004 = vpop.permute.xlu0 %1003
      %1005 = vrot.lane.b32.xlu0 %v984, 4
      %v1006 = vpop.permute.xlu0 %1005
      %1007 = vrot.lane.b32.xlu0 %v985, 4
      %v1008 = vpop.permute.xlu0 %1007
      %1009 = vrot.lane.b32.xlu0 %v986, 4
      %v1010 = vpop.permute.xlu0 %1009
      %1011 = vrot.lane.b32.xlu0 %v987, 4
      %v1012 = vpop.permute.xlu0 %1011
      %1013 = vrot.lane.b32.xlu0 %v988, 4
      %v1014 = vpop.permute.xlu0 %1013
      %1015 = vrot.lane.b32.xlu0 %v989, 4
      %v1016 = vpop.permute.xlu0 %1015
      %1017 = vrot.lane.b32.xlu0 %v990, 4
      %v1018 = vpop.permute.xlu0 %1017
      %1019 = vrot.lane.b32.xlu0 %v991, 4
      %v1020 = vpop.permute.xlu0 %1019
      %1021 = vrot.lane.b32.xlu0 %v992, 4
      %v1022 = vpop.permute.xlu0 %1021
      %1023 = vrot.lane.b32.xlu0 %v993, 4
      %v1024 = vpop.permute.xlu0 %1023
      %1025 = vrot.lane.b32.xlu0 %v994, 4
      %v1026 = vpop.permute.xlu0 %1025
      %v1027 = vunpack.c.l.b16 %v722
      %v1028 = vunpack.c.l.b16 %v725
      %v1029 = vunpack.c.l.b16 %v729
      %v1030 = vunpack.c.l.b16 %v732
      %v1031 = vunpack.c.l.b16 %v736
      %v1032 = vunpack.c.l.b16 %v739
      %v1033 = vunpack.c.l.b16 %v743
      %v1034 = vunpack.c.l.b16 %v746
      %v1035 = vunpack.c.l.b16 %v750
      %v1036 = vunpack.c.l.b16 %v753
      %v1037 = vunpack.c.l.b16 %v757
      %v1038 = vunpack.c.l.b16 %v760
      %v1039 = vunpack.c.l.b16 %v764
      %v1040 = vunpack.c.l.b16 %v767
      %v1041 = vunpack.c.l.b16 %v771
      %v1042 = vunpack.c.l.b16 %v774
      %v1043 = vunpack.c.l.b16 %v778
      %v1044 = vunpack.c.l.b16 %v781
      %v1045 = vunpack.c.l.b16 %v785
      %v1046 = vunpack.c.l.b16 %v788
      %v1047 = vunpack.c.l.b16 %v792
      %v1048 = vunpack.c.l.b16 %v795
      %v1049 = vunpack.c.l.b16 %v799
      %v1050 = vunpack.c.l.b16 %v802
      %v1051 = vunpack.c.l.b16 %v806
      %v1052 = vunpack.c.l.b16 %v809
      %v1053 = vunpack.c.l.b16 %v813
      %v1054 = vunpack.c.l.b16 %v816
      %v1055 = vunpack.c.l.b16 %v820
      %v1056 = vunpack.c.l.b16 %v823
      %v1057 = vunpack.c.l.b16 %v827
      %v1058 = vunpack.c.l.b16 %v830
      %v1059 = vpack.c.b16 %v1028, %v1027
      %v1060 = vpack.c.b16 %v1030, %v1029
      %v1061 = vpack.c.b16 %v1032, %v1031
      %v1062 = vpack.c.b16 %v1034, %v1033
      %v1063 = vpack.c.b16 %v1036, %v1035
      %v1064 = vpack.c.b16 %v1038, %v1037
      %v1065 = vpack.c.b16 %v1040, %v1039
      %v1066 = vpack.c.b16 %v1042, %v1041
      %v1067 = vpack.c.b16 %v1044, %v1043
      %v1068 = vpack.c.b16 %v1046, %v1045
      %v1069 = vpack.c.b16 %v1048, %v1047
      %v1070 = vpack.c.b16 %v1050, %v1049
      %v1071 = vpack.c.b16 %v1052, %v1051
      %v1072 = vpack.c.b16 %v1054, %v1053
      %v1073 = vpack.c.b16 %v1056, %v1055
      %v1074 = vpack.c.b16 %v1058, %v1057
      %1075 = vrot.lane.b32.xlu0 %v1059, 8
      %v1076 = vpop.permute.xlu0 %1075
      %1077 = vrot.lane.b32.xlu0 %v1060, 8
      %v1078 = vpop.permute.xlu0 %1077
      %1079 = vrot.lane.b32.xlu0 %v1061, 8
      %v1080 = vpop.permute.xlu0 %1079
      %1081 = vrot.lane.b32.xlu0 %v1062, 8
      %v1082 = vpop.permute.xlu0 %1081
      %1083 = vrot.lane.b32.xlu0 %v1063, 8
      %v1084 = vpop.permute.xlu0 %1083
      %1085 = vrot.lane.b32.xlu0 %v1064, 8
      %v1086 = vpop.permute.xlu0 %1085
      %1087 = vrot.lane.b32.xlu0 %v1065, 8
      %v1088 = vpop.permute.xlu0 %1087
      %1089 = vrot.lane.b32.xlu0 %v1066, 8
      %v1090 = vpop.permute.xlu0 %1089
      %1091 = vrot.lane.b32.xlu0 %v1067, 8
      %v1092 = vpop.permute.xlu0 %1091
      %1093 = vrot.lane.b32.xlu0 %v1068, 8
      %v1094 = vpop.permute.xlu0 %1093
      %1095 = vrot.lane.b32.xlu0 %v1069, 8
      %v1096 = vpop.permute.xlu0 %1095
      %1097 = vrot.lane.b32.xlu0 %v1070, 8
      %v1098 = vpop.permute.xlu0 %1097
      %1099 = vrot.lane.b32.xlu0 %v1071, 8
      %v1100 = vpop.permute.xlu0 %1099
      %1101 = vrot.lane.b32.xlu0 %v1072, 8
      %v1102 = vpop.permute.xlu0 %1101
      %1103 = vrot.lane.b32.xlu0 %v1073, 8
      %v1104 = vpop.permute.xlu0 %1103
      %1105 = vrot.lane.b32.xlu0 %v1074, 8
      %v1106 = vpop.permute.xlu0 %1105
      %v1107 = vunpack.c.l.b16 %v275
      %v1108 = vunpack.c.l.b16 %v276
      %v1109 = vpack.c.b16 %v1108, %v1107
      %1110 = vrot.lane.b32.xlu0 %v932, 12
      %v1111 = vpop.permute.xlu0 %1110
      %1112 = vrot.lane.b32.xlu0 %v933, 12
      %v1113 = vpop.permute.xlu0 %1112
      %1114 = vrot.lane.b32.xlu0 %v934, 12
      %v1115 = vpop.permute.xlu0 %1114
      %1116 = vrot.lane.b32.xlu0 %v935, 12
      %v1117 = vpop.permute.xlu0 %1116
      %1118 = vrot.lane.b32.xlu0 %v936, 12
      %v1119 = vpop.permute.xlu0 %1118
      %1120 = vrot.lane.b32.xlu0 %v937, 12
      %v1121 = vpop.permute.xlu0 %1120
      %1122 = vrot.lane.b32.xlu0 %v938, 12
      %v1123 = vpop.permute.xlu0 %1122
      %1124 = vrot.lane.b32.xlu0 %v939, 12
      %v1125 = vpop.permute.xlu0 %1124
      %1126 = vrot.lane.b32.xlu0 %v940, 12
      %v1127 = vpop.permute.xlu0 %1126
      %1128 = vrot.lane.b32.xlu0 %v941, 12
      %v1129 = vpop.permute.xlu0 %1128
      %1130 = vrot.lane.b32.xlu0 %v942, 12
      %v1131 = vpop.permute.xlu0 %1130
      %1132 = vrot.lane.b32.xlu0 %v943, 12
      %v1133 = vpop.permute.xlu0 %1132
      %1134 = vrot.lane.b32.xlu0 %v944, 12
      %v1135 = vpop.permute.xlu0 %1134
      %1136 = vrot.lane.b32.xlu0 %v945, 12
      %v1137 = vpop.permute.xlu0 %1136
      %1138 = vrot.lane.b32.xlu0 %v946, 12
      %v1139 = vpop.permute.xlu0 %1138
      %1140 = vrot.lane.b32.xlu0 %v1109, 12
      %v1141 = vpop.permute.xlu0 %1140
      %v1142 = vunpack.c.l.b16 %v844
      %v1143 = vunpack.c.l.b16 %v854
      %v1144 = vpack.c.b16 %v1143, %v1142
      %1145 = vrot.lane.b32.xlu0 %v980, 16
      %v1146 = vpop.permute.xlu0 %1145
      %1147 = vrot.lane.b32.xlu0 %v981, 16
      %v1148 = vpop.permute.xlu0 %1147
      %1149 = vrot.lane.b32.xlu0 %v982, 16
      %v1150 = vpop.permute.xlu0 %1149
      %1151 = vrot.lane.b32.xlu0 %v983, 16
      %v1152 = vpop.permute.xlu0 %1151
      %1153 = vrot.lane.b32.xlu0 %v984, 16
      %v1154 = vpop.permute.xlu0 %1153
      %1155 = vrot.lane.b32.xlu0 %v985, 16
      %v1156 = vpop.permute.xlu0 %1155
      %1157 = vrot.lane.b32.xlu0 %v986, 16
      %v1158 = vpop.permute.xlu0 %1157
      %1159 = vrot.lane.b32.xlu0 %v987, 16
      %v1160 = vpop.permute.xlu0 %1159
      %1161 = vrot.lane.b32.xlu0 %v988, 16
      %v1162 = vpop.permute.xlu0 %1161
      %1163 = vrot.lane.b32.xlu0 %v989, 16
      %v1164 = vpop.permute.xlu0 %1163
      %1165 = vrot.lane.b32.xlu0 %v990, 16
      %v1166 = vpop.permute.xlu0 %1165
      %1167 = vrot.lane.b32.xlu0 %v991, 16
      %v1168 = vpop.permute.xlu0 %1167
      %1169 = vrot.lane.b32.xlu0 %v992, 16
      %v1170 = vpop.permute.xlu0 %1169
      %1171 = vrot.lane.b32.xlu0 %v993, 16
      %v1172 = vpop.permute.xlu0 %1171
      %1173 = vrot.lane.b32.xlu0 %v994, 16
      %v1174 = vpop.permute.xlu0 %1173
      %1175 = vrot.lane.b32.xlu0 %v1144, 16
      %v1176 = vpop.permute.xlu0 %1175
      %v1177 = vunpack.c.l.b16 %v861
      %v1178 = vunpack.c.l.b16 %v864
      %v1179 = vpack.c.b16 %v1178, %v1177
      %1180 = vrot.lane.b32.xlu0 %v1060, 20
      %v1181 = vpop.permute.xlu0 %1180
      %1182 = vrot.lane.b32.xlu0 %v1061, 20
      %v1183 = vpop.permute.xlu0 %1182
      %1184 = vrot.lane.b32.xlu0 %v1062, 20
      %v1185 = vpop.permute.xlu0 %1184
      %1186 = vrot.lane.b32.xlu0 %v1063, 20
      %v1187 = vpop.permute.xlu0 %1186
      %1188 = vrot.lane.b32.xlu0 %v1064, 20
      %v1189 = vpop.permute.xlu0 %1188
      %1190 = vrot.lane.b32.xlu0 %v1065, 20
      %v1191 = vpop.permute.xlu0 %1190
      %1192 = vrot.lane.b32.xlu0 %v1066, 20
      %v1193 = vpop.permute.xlu0 %1192
      %1194 = vrot.lane.b32.xlu0 %v1067, 20
      %v1195 = vpop.permute.xlu0 %1194
      %1196 = vrot.lane.b32.xlu0 %v1068, 20
      %v1197 = vpop.permute.xlu0 %1196
      %1198 = vrot.lane.b32.xlu0 %v1069, 20
      %v1199 = vpop.permute.xlu0 %1198
      %1200 = vrot.lane.b32.xlu0 %v1070, 20
      %v1201 = vpop.permute.xlu0 %1200
      %1202 = vrot.lane.b32.xlu0 %v1071, 20
      %v1203 = vpop.permute.xlu0 %1202
      %1204 = vrot.lane.b32.xlu0 %v1072, 20
      %v1205 = vpop.permute.xlu0 %1204
      %1206 = vrot.lane.b32.xlu0 %v1073, 20
      %v1207 = vpop.permute.xlu0 %1206
      %1208 = vrot.lane.b32.xlu0 %v1074, 20
      %v1209 = vpop.permute.xlu0 %1208
      %1210 = vrot.lane.b32.xlu0 %v1179, 20
      %v1211 = vpop.permute.xlu0 %1210
      %v1212 = vunpack.c.l.b16 %v278
      %v1213 = vunpack.c.l.b16 %v279
      %v1214 = vpack.c.b16 %v1213, %v1212
      %1215 = vrot.lane.b32.xlu0 %v933, 24
      %v1216 = vpop.permute.xlu0 %1215
      %1217 = vrot.lane.b32.xlu0 %v934, 24
      %v1218 = vpop.permute.xlu0 %1217
      %1219 = vrot.lane.b32.xlu0 %v935, 24
      %v1220 = vpop.permute.xlu0 %1219
      %1221 = vrot.lane.b32.xlu0 %v936, 24
      %v1222 = vpop.permute.xlu0 %1221
      %1223 = vrot.lane.b32.xlu0 %v937, 24
      %v1224 = vpop.permute.xlu0 %1223
      %1225 = vrot.lane.b32.xlu0 %v938, 24
      %v1226 = vpop.permute.xlu0 %1225
      %1227 = vrot.lane.b32.xlu0 %v939, 24
      %v1228 = vpop.permute.xlu0 %1227
      %1229 = vrot.lane.b32.xlu0 %v940, 24
      %v1230 = vpop.permute.xlu0 %1229
      %1231 = vrot.lane.b32.xlu0 %v941, 24
      %v1232 = vpop.permute.xlu0 %1231
      %1233 = vrot.lane.b32.xlu0 %v942, 24
      %v1234 = vpop.permute.xlu0 %1233
      %1235 = vrot.lane.b32.xlu0 %v943, 24
      %v1236 = vpop.permute.xlu0 %1235
      %1237 = vrot.lane.b32.xlu0 %v944, 24
      %v1238 = vpop.permute.xlu0 %1237
      %1239 = vrot.lane.b32.xlu0 %v945, 24
      %v1240 = vpop.permute.xlu0 %1239
      %1241 = vrot.lane.b32.xlu0 %v946, 24
      %v1242 = vpop.permute.xlu0 %1241
      %1243 = vrot.lane.b32.xlu0 %v1109, 24
      %v1244 = vpop.permute.xlu0 %1243
      %1245 = vrot.lane.b32.xlu0 %v1214, 24
      %v1246 = vpop.permute.xlu0 %1245
      %v1247 = vunpack.c.l.b16 %v878
      %v1248 = vunpack.c.l.b16 %v888
      %v1249 = vpack.c.b16 %v1248, %v1247
      %1250 = vrot.lane.b32.xlu0 %v981, 28
      %v1251 = vpop.permute.xlu0 %1250
      %1252 = vrot.lane.b32.xlu0 %v982, 28
      %v1253 = vpop.permute.xlu0 %1252
      %1254 = vrot.lane.b32.xlu0 %v983, 28
      %v1255 = vpop.permute.xlu0 %1254
      %1256 = vrot.lane.b32.xlu0 %v984, 28
      %v1257 = vpop.permute.xlu0 %1256
      %1258 = vrot.lane.b32.xlu0 %v985, 28
      %v1259 = vpop.permute.xlu0 %1258
      %1260 = vrot.lane.b32.xlu0 %v986, 28
      %v1261 = vpop.permute.xlu0 %1260
      %1262 = vrot.lane.b32.xlu0 %v987, 28
      %v1263 = vpop.permute.xlu0 %1262
      %1264 = vrot.lane.b32.xlu0 %v988, 28
      %v1265 = vpop.permute.xlu0 %1264
      %1266 = vrot.lane.b32.xlu0 %v989, 28
      %v1267 = vpop.permute.xlu0 %1266
      %1268 = vrot.lane.b32.xlu0 %v990, 28
      %v1269 = vpop.permute.xlu0 %1268
      %1270 = vrot.lane.b32.xlu0 %v991, 28
      %v1271 = vpop.permute.xlu0 %1270
      %1272 = vrot.lane.b32.xlu0 %v992, 28
      %v1273 = vpop.permute.xlu0 %1272
      %1274 = vrot.lane.b32.xlu0 %v993, 28
      %v1275 = vpop.permute.xlu0 %1274
      %1276 = vrot.lane.b32.xlu0 %v994, 28
      %v1277 = vpop.permute.xlu0 %1276
      %1278 = vrot.lane.b32.xlu0 %v1144, 28
      %v1279 = vpop.permute.xlu0 %1278
      %1280 = vrot.lane.b32.xlu0 %v1249, 28
      %v1281 = vpop.permute.xlu0 %1280
      %v1282 = vunpack.c.l.b16 %v895
      %v1283 = vunpack.c.l.b16 %v898
      %v1284 = vpack.c.b16 %v1283, %v1282
      %1285 = vrot.lane.b32.xlu0 %v1061, 32
      %v1286 = vpop.permute.xlu0 %1285
      %1287 = vrot.lane.b32.xlu0 %v1062, 32
      %v1288 = vpop.permute.xlu0 %1287
      %1289 = vrot.lane.b32.xlu0 %v1063, 32
      %v1290 = vpop.permute.xlu0 %1289
      %1291 = vrot.lane.b32.xlu0 %v1064, 32
      %v1292 = vpop.permute.xlu0 %1291
      %1293 = vrot.lane.b32.xlu0 %v1065, 32
      %v1294 = vpop.permute.xlu0 %1293
      %1295 = vrot.lane.b32.xlu0 %v1066, 32
      %v1296 = vpop.permute.xlu0 %1295
      %1297 = vrot.lane.b32.xlu0 %v1067, 32
      %v1298 = vpop.permute.xlu0 %1297
      %1299 = vrot.lane.b32.xlu0 %v1068, 32
      %v1300 = vpop.permute.xlu0 %1299
      %1301 = vrot.lane.b32.xlu0 %v1069, 32
      %v1302 = vpop.permute.xlu0 %1301
      %1303 = vrot.lane.b32.xlu0 %v1070, 32
      %v1304 = vpop.permute.xlu0 %1303
      %1305 = vrot.lane.b32.xlu0 %v1071, 32
      %v1306 = vpop.permute.xlu0 %1305
      %1307 = vrot.lane.b32.xlu0 %v1072, 32
      %v1308 = vpop.permute.xlu0 %1307
      %1309 = vrot.lane.b32.xlu0 %v1073, 32
      %v1310 = vpop.permute.xlu0 %1309
      %1311 = vrot.lane.b32.xlu0 %v1074, 32
      %v1312 = vpop.permute.xlu0 %1311
      %1313 = vrot.lane.b32.xlu0 %v1179, 32
      %v1314 = vpop.permute.xlu0 %1313
      %1315 = vrot.lane.b32.xlu0 %v1284, 32
      %v1316 = vpop.permute.xlu0 %1315
      %vm1317 = vcmask 31744
      %v1320 = vsel %vm1317, %v931, %v996
      %v1323 = vsel %vm1317, %v932, %v998
      %v1326 = vsel %vm1317, %v933, %v1000
      %v1329 = vsel %vm1317, %v934, %v1002
      %v1332 = vsel %vm1317, %v935, %v1004
      %v1335 = vsel %vm1317, %v936, %v1006
      %v1338 = vsel %vm1317, %v937, %v1008
      %v1341 = vsel %vm1317, %v938, %v1010
      %v1344 = vsel %vm1317, %v939, %v1012
      %v1347 = vsel %vm1317, %v940, %v1014
      %v1350 = vsel %vm1317, %v941, %v1016
      %v1353 = vsel %vm1317, %v942, %v1018
      %v1356 = vsel %vm1317, %v943, %v1020
      %v1359 = vsel %vm1317, %v944, %v1022
      %v1362 = vsel %vm1317, %v945, %v1024
      %v1365 = vsel %vm1317, %v946, %v1026
      %vm1366 = vcmask 64512
      %v1368 = vsel %vm1366, %v1320, %v1076
      %v1370 = vsel %vm1366, %v1323, %v1078
      %v1372 = vsel %vm1366, %v1326, %v1080
      %v1374 = vsel %vm1366, %v1329, %v1082
      %v1376 = vsel %vm1366, %v1332, %v1084
      %v1378 = vsel %vm1366, %v1335, %v1086
      %v1380 = vsel %vm1366, %v1338, %v1088
      %v1382 = vsel %vm1366, %v1341, %v1090
      %v1384 = vsel %vm1366, %v1344, %v1092
      %v1386 = vsel %vm1366, %v1347, %v1094
      %v1388 = vsel %vm1366, %v1350, %v1096
      %v1390 = vsel %vm1366, %v1353, %v1098
      %v1392 = vsel %vm1366, %v1356, %v1100
      %v1394 = vsel %vm1366, %v1359, %v1102
      %v1396 = vsel %vm1366, %v1362, %v1104
      %v1398 = vsel %vm1366, %v1365, %v1106
      %vm1399 = vcmask 97280
      %v1401 = vsel %vm1399, %v1368, %v1111
      %v1403 = vsel %vm1399, %v1370, %v1113
      %v1405 = vsel %vm1399, %v1372, %v1115
      %v1407 = vsel %vm1399, %v1374, %v1117
      %v1409 = vsel %vm1399, %v1376, %v1119
      %v1411 = vsel %vm1399, %v1378, %v1121
      %v1413 = vsel %vm1399, %v1380, %v1123
      %v1415 = vsel %vm1399, %v1382, %v1125
      %v1417 = vsel %vm1399, %v1384, %v1127
      %v1419 = vsel %vm1399, %v1386, %v1129
      %v1421 = vsel %vm1399, %v1388, %v1131
      %v1423 = vsel %vm1399, %v1390, %v1133
      %v1425 = vsel %vm1399, %v1392, %v1135
      %v1427 = vsel %vm1399, %v1394, %v1137
      %v1429 = vsel %vm1399, %v1396, %v1139
      %v1431 = vsel %vm1399, %v1398, %v1141
      %vm1432 = vcmask 130048
      %v1434 = vsel %vm1432, %v1401, %v1146
      %v1436 = vsel %vm1432, %v1403, %v1148
      %v1438 = vsel %vm1432, %v1405, %v1150
      %v1440 = vsel %vm1432, %v1407, %v1152
      %v1442 = vsel %vm1432, %v1409, %v1154
      %v1444 = vsel %vm1432, %v1411, %v1156
      %v1446 = vsel %vm1432, %v1413, %v1158
      %v1448 = vsel %vm1432, %v1415, %v1160
      %v1450 = vsel %vm1432, %v1417, %v1162
      %v1452 = vsel %vm1432, %v1419, %v1164
      %v1454 = vsel %vm1432, %v1421, %v1166
      %v1456 = vsel %vm1432, %v1423, %v1168
      %v1458 = vsel %vm1432, %v1425, %v1170
      %v1460 = vsel %vm1432, %v1427, %v1172
      %v1462 = vsel %vm1432, %v1429, %v1174
      %v1464 = vsel %vm1432, %v1431, %v1176
      %vm1465 = vcmask 162816
      %v1467 = vsel %vm1465, %v1434, %v1181
      %v1469 = vsel %vm1465, %v1436, %v1183
      %v1471 = vsel %vm1465, %v1438, %v1185
      %v1473 = vsel %vm1465, %v1440, %v1187
      %v1475 = vsel %vm1465, %v1442, %v1189
      %v1477 = vsel %vm1465, %v1444, %v1191
      %v1479 = vsel %vm1465, %v1446, %v1193
      %v1481 = vsel %vm1465, %v1448, %v1195
      %v1483 = vsel %vm1465, %v1450, %v1197
      %v1485 = vsel %vm1465, %v1452, %v1199
      %v1487 = vsel %vm1465, %v1454, %v1201
      %v1489 = vsel %vm1465, %v1456, %v1203
      %v1491 = vsel %vm1465, %v1458, %v1205
      %v1493 = vsel %vm1465, %v1460, %v1207
      %v1495 = vsel %vm1465, %v1462, %v1209
      %v1497 = vsel %vm1465, %v1464, %v1211
      %vm1498 = vcmask 195584
      %v1500 = vsel %vm1498, %v1467, %v1216
      %v1502 = vsel %vm1498, %v1469, %v1218
      %v1504 = vsel %vm1498, %v1471, %v1220
      %v1506 = vsel %vm1498, %v1473, %v1222
      %v1508 = vsel %vm1498, %v1475, %v1224
      %v1510 = vsel %vm1498, %v1477, %v1226
      %v1512 = vsel %vm1498, %v1479, %v1228
      %v1514 = vsel %vm1498, %v1481, %v1230
      %v1516 = vsel %vm1498, %v1483, %v1232
      %v1518 = vsel %vm1498, %v1485, %v1234
      %v1520 = vsel %vm1498, %v1487, %v1236
      %v1522 = vsel %vm1498, %v1489, %v1238
      %v1524 = vsel %vm1498, %v1491, %v1240
      %v1526 = vsel %vm1498, %v1493, %v1242
      %v1528 = vsel %vm1498, %v1495, %v1244
      %v1530 = vsel %vm1498, %v1497, %v1246
      %vm1531 = vcmask 228352
      %v1533 = vsel %vm1531, %v1500, %v1251
      %v1535 = vsel %vm1531, %v1502, %v1253
      %v1537 = vsel %vm1531, %v1504, %v1255
      %v1539 = vsel %vm1531, %v1506, %v1257
      %v1541 = vsel %vm1531, %v1508, %v1259
      %v1543 = vsel %vm1531, %v1510, %v1261
      %v1545 = vsel %vm1531, %v1512, %v1263
      %v1547 = vsel %vm1531, %v1514, %v1265
      %v1549 = vsel %vm1531, %v1516, %v1267
      %v1551 = vsel %vm1531, %v1518, %v1269
      %v1553 = vsel %vm1531, %v1520, %v1271
      %v1555 = vsel %vm1531, %v1522, %v1273
      %v1557 = vsel %vm1531, %v1524, %v1275
      %v1559 = vsel %vm1531, %v1526, %v1277
      %v1561 = vsel %vm1531, %v1528, %v1279
      %v1563 = vsel %vm1531, %v1530, %v1281
      %vm1564 = vcmask 261120
      %v1566 = vsel %vm1564, %v1533, %v1286
      %v1568 = vsel %vm1564, %v1535, %v1288
      %v1570 = vsel %vm1564, %v1537, %v1290
      %v1572 = vsel %vm1564, %v1539, %v1292
      %v1574 = vsel %vm1564, %v1541, %v1294
      %v1576 = vsel %vm1564, %v1543, %v1296
      %v1578 = vsel %vm1564, %v1545, %v1298
      %v1580 = vsel %vm1564, %v1547, %v1300
      %v1582 = vsel %vm1564, %v1549, %v1302
      %v1584 = vsel %vm1564, %v1551, %v1304
      %v1586 = vsel %vm1564, %v1553, %v1306
      %v1588 = vsel %vm1564, %v1555, %v1308
      %v1590 = vsel %vm1564, %v1557, %v1310
      %v1592 = vsel %vm1564, %v1559, %v1312
      %v1594 = vsel %vm1564, %v1561, %v1314
      %v1596 = vsel %vm1564, %v1563, %v1316
      %v1597 = vld [vmem:[%s1] sm:$0xf]
      %v1598 = vld [vmem:[%s1 + $0x4] sm:$0xf]
      %v1599 = vld [vmem:[%s1 + $0x8] sm:$0xf]
      %v1600 = vld [vmem:[%s1 + $0xc] sm:$0xf]
      %v1601 = vld [vmem:[%s1 + $0x10] sm:$0x3]
      %v1607 = vunpack.c.l.b16 %v1597
      %v1608 = vunpack.c.l.b16 %v1598
      %v1609 = vunpack.c.l.b16 %v1599
      %v1610 = vunpack.c.l.b16 %v1600
      %v1611 = vunpack.c.l.b16 %v1601
      %v1612 = vpack.c.b16 %v1608, %v1607
      %v1613 = vpack.c.b16 %v1610, %v1609
      %v1614 = vpack.c.b16 %v1611, %v1611
      %vm1617 = vcmask 293888
      %v1618 = vsel %vm1617, %v1566, 0
      %v1620 = vsel %vm1617, %v1568, 0
      %v1622 = vsel %vm1617, %v1570, 0
      %v1624 = vsel %vm1617, %v1572, 0
      %v1626 = vsel %vm1617, %v1574, 0
      %v1628 = vsel %vm1617, %v1576, 0
      %v1630 = vsel %vm1617, %v1578, 0
      %v1632 = vsel %vm1617, %v1580, 0
      %v1634 = vsel %vm1617, %v1582, 0
      %v1636 = vsel %vm1617, %v1584, 0
      %v1638 = vsel %vm1617, %v1586, 0
      %v1640 = vsel %vm1617, %v1588, 0
      %v1642 = vsel %vm1617, %v1590, 0
      %v1644 = vsel %vm1617, %v1592, 0
      %v1646 = vsel %vm1617, %v1594, 0
      %v1648 = vsel %vm1617, %v1596, 0
      %vm1650 = vcmask 1041408
      %v1652 = vsel %vm1650, %v1614, 0
      %1654 = vmatpush.bf16.msra.mxu0 0
      %1655 = vmatpush.bf16.msra.mxu0 0
      %1656 = vmatpush.bf16.msra.mxu0 0
      %1657 = vmatpush.bf16.msra.mxu0 0
      %1658 = vmatpush.bf16.msra.mxu0 0
      %1659 = vmatpush.bf16.msra.mxu0 %v1652
      %1660 = vmatpush.bf16.msra.mxu0 %v1613
      %1661 = vmatpush.bf16.msra.mxu0 %v1612
      %1662 = vmatmul.bf16.gmra.mxu0 %v1618
      %v1663 = vpop.f32.mrf.mxu0
      %v1664 = vadd.f32 0.0, %v1663
      %v1665 = vpop.f32.mrf.mxu0
      %v1666 = vadd.f32 0.0, %v1665
      %1667 = vmatmul.bf16.gmra.mxu0 %v1620
      %v1668 = vpop.f32.mrf.mxu0
      %v1669 = vadd.f32 0.0, %v1668
      %v1670 = vpop.f32.mrf.mxu0
      %v1671 = vadd.f32 0.0, %v1670
      %1672 = vmatmul.bf16.gmra.mxu0 %v1622
      %v1673 = vpop.f32.mrf.mxu0
      %v1674 = vadd.f32 0.0, %v1673
      %v1675 = vpop.f32.mrf.mxu0
      %v1676 = vadd.f32 0.0, %v1675
      %1677 = vmatmul.bf16.gmra.mxu0 %v1624
      %v1678 = vpop.f32.mrf.mxu0
      %v1679 = vadd.f32 0.0, %v1678
      %v1680 = vpop.f32.mrf.mxu0
      %v1681 = vadd.f32 0.0, %v1680
      %1682 = vmatmul.bf16.gmra.mxu0 %v1626
      %v1683 = vpop.f32.mrf.mxu0
      %v1684 = vadd.f32 0.0, %v1683
      %v1685 = vpop.f32.mrf.mxu0
      %v1686 = vadd.f32 0.0, %v1685
      %1687 = vmatmul.bf16.gmra.mxu0 %v1628
      %v1688 = vpop.f32.mrf.mxu0
      %v1689 = vadd.f32 0.0, %v1688
      %v1690 = vpop.f32.mrf.mxu0
      %v1691 = vadd.f32 0.0, %v1690
      %1692 = vmatmul.bf16.gmra.mxu0 %v1630
      %v1693 = vpop.f32.mrf.mxu0
      %v1694 = vadd.f32 0.0, %v1693
      %v1695 = vpop.f32.mrf.mxu0
      %v1696 = vadd.f32 0.0, %v1695
      %1697 = vmatmul.bf16.gmra.mxu0 %v1632
      %v1698 = vpop.f32.mrf.mxu0
      %v1699 = vadd.f32 0.0, %v1698
      %v1700 = vpop.f32.mrf.mxu0
      %v1701 = vadd.f32 0.0, %v1700
      %1702 = vmatmul.bf16.gmra.mxu0 %v1634
      %v1703 = vpop.f32.mrf.mxu0
      %v1704 = vadd.f32 0.0, %v1703
      %v1705 = vpop.f32.mrf.mxu0
      %v1706 = vadd.f32 0.0, %v1705
      %1707 = vmatmul.bf16.gmra.mxu0 %v1636
      %v1708 = vpop.f32.mrf.mxu0
      %v1709 = vadd.f32 0.0, %v1708
      %v1710 = vpop.f32.mrf.mxu0
      %v1711 = vadd.f32 0.0, %v1710
      %1712 = vmatmul.bf16.gmra.mxu0 %v1638
      %v1713 = vpop.f32.mrf.mxu0
      %v1714 = vadd.f32 0.0, %v1713
      %v1715 = vpop.f32.mrf.mxu0
      %v1716 = vadd.f32 0.0, %v1715
      %1717 = vmatmul.bf16.gmra.mxu0 %v1640
      %v1718 = vpop.f32.mrf.mxu0
      %v1719 = vadd.f32 0.0, %v1718
      %v1720 = vpop.f32.mrf.mxu0
      %v1721 = vadd.f32 0.0, %v1720
      %1722 = vmatmul.bf16.gmra.mxu0 %v1642
      %v1723 = vpop.f32.mrf.mxu0
      %v1724 = vadd.f32 0.0, %v1723
      %v1725 = vpop.f32.mrf.mxu0
      %v1726 = vadd.f32 0.0, %v1725
      %1727 = vmatmul.bf16.gmra.mxu0 %v1644
      %v1728 = vpop.f32.mrf.mxu0
      %v1729 = vadd.f32 0.0, %v1728
      %v1730 = vpop.f32.mrf.mxu0
      %v1731 = vadd.f32 0.0, %v1730
      %1732 = vmatmul.bf16.gmra.mxu0 %v1646
      %v1733 = vpop.f32.mrf.mxu0
      %v1734 = vadd.f32 0.0, %v1733
      %v1735 = vpop.f32.mrf.mxu0
      %v1736 = vadd.f32 0.0, %v1735
      %1737 = vmatmul.bf16.gmra.mxu0 %v1648
      %v1738 = vpop.f32.mrf.mxu0
      %v1739 = vadd.f32 0.0, %v1738
      %v1740 = vpop.f32.mrf.mxu0
      %v1741 = vadd.f32 0.0, %v1740
      %1742 = vdwg.mxu0
      %v1743 = vpack.c.bf16 %v1664, %v1664
      %v1744 = vpack.c.bf16 %v1666, %v1666
      %v1745 = vpack.c.bf16 %v1669, %v1669
      %v1746 = vpack.c.bf16 %v1671, %v1671
      %v1747 = vpack.c.bf16 %v1674, %v1674
      %v1748 = vpack.c.bf16 %v1676, %v1676
      %v1749 = vpack.c.bf16 %v1679, %v1679
      %v1750 = vpack.c.bf16 %v1681, %v1681
      %v1751 = vpack.c.bf16 %v1684, %v1684
      %v1752 = vpack.c.bf16 %v1686, %v1686
      %v1753 = vpack.c.bf16 %v1689, %v1689
      %v1754 = vpack.c.bf16 %v1691, %v1691
      %v1755 = vpack.c.bf16 %v1694, %v1694
      %v1756 = vpack.c.bf16 %v1696, %v1696
      %v1757 = vpack.c.bf16 %v1699, %v1699
      %v1758 = vpack.c.bf16 %v1701, %v1701
      %v1759 = vpack.c.bf16 %v1704, %v1704
      %v1760 = vpack.c.bf16 %v1706, %v1706
      %v1761 = vpack.c.bf16 %v1709, %v1709
      %v1762 = vpack.c.bf16 %v1711, %v1711
      %v1763 = vpack.c.bf16 %v1714, %v1714
      %v1764 = vpack.c.bf16 %v1716, %v1716
      %v1765 = vpack.c.bf16 %v1719, %v1719
      %v1766 = vpack.c.bf16 %v1721, %v1721
      %v1767 = vpack.c.bf16 %v1724, %v1724
      %v1768 = vpack.c.bf16 %v1726, %v1726
      %v1769 = vpack.c.bf16 %v1729, %v1729
      %v1770 = vpack.c.bf16 %v1731, %v1731
      %v1771 = vpack.c.bf16 %v1734, %v1734
      %v1772 = vpack.c.bf16 %v1736, %v1736
      %v1773 = vpack.c.bf16 %v1739, %v1739
      %v1774 = vpack.c.bf16 %v1741, %v1741
      %vm1775 = vcmask 257024
      %1776 = vst.msk [vmem:[%s218] sm:$0xf] %vm1775, %v1743
      %1777 = vst.msk [vmem:[%s218 + $0x4] sm:$0xf] %vm1775, %v1744
      %1778 = vst.msk [vmem:[%s218 + $0x8] sm:$0xf] %vm1775, %v1745
      %1779 = vst.msk [vmem:[%s218 + $0xc] sm:$0xf] %vm1775, %v1746
      %1780 = vst.msk [vmem:[%s218 + $0x10] sm:$0xf] %vm1775, %v1747
      %1781 = vst.msk [vmem:[%s218 + $0x14] sm:$0xf] %vm1775, %v1748
      %1782 = vst.msk [vmem:[%s218 + $0x18] sm:$0xf] %vm1775, %v1749
      %1783 = vst.msk [vmem:[%s218 + $0x1c] sm:$0xf] %vm1775, %v1750
      %1784 = vst.msk [vmem:[%s218 + $0x20] sm:$0xf] %vm1775, %v1751
      %1785 = vst.msk [vmem:[%s218 + $0x24] sm:$0xf] %vm1775, %v1752
      %1786 = vst.msk [vmem:[%s218 + $0x28] sm:$0xf] %vm1775, %v1753
      %1787 = vst.msk [vmem:[%s218 + $0x2c] sm:$0xf] %vm1775, %v1754
      %1788 = vst.msk [vmem:[%s218 + $0x30] sm:$0xf] %vm1775, %v1755
      %1789 = vst.msk [vmem:[%s218 + $0x34] sm:$0xf] %vm1775, %v1756
      %1790 = vst.msk [vmem:[%s218 + $0x38] sm:$0xf] %vm1775, %v1757
      %1791 = vst.msk [vmem:[%s218 + $0x3c] sm:$0xf] %vm1775, %v1758
      %1792 = vst.msk [vmem:[%s218 + $0x40] sm:$0xf] %vm1775, %v1759
      %1793 = vst.msk [vmem:[%s218 + $0x44] sm:$0xf] %vm1775, %v1760
      %1794 = vst.msk [vmem:[%s218 + $0x48] sm:$0xf] %vm1775, %v1761
      %1795 = vst.msk [vmem:[%s218 + $0x4c] sm:$0xf] %vm1775, %v1762
      %1796 = vst.msk [vmem:[%s218 + $0x50] sm:$0xf] %vm1775, %v1763
      %1797 = vst.msk [vmem:[%s218 + $0x54] sm:$0xf] %vm1775, %v1764
      %1798 = vst.msk [vmem:[%s218 + $0x58] sm:$0xf] %vm1775, %v1765
      %1799 = vst.msk [vmem:[%s218 + $0x5c] sm:$0xf] %vm1775, %v1766
      %1800 = vst.msk [vmem:[%s218 + $0x60] sm:$0xf] %vm1775, %v1767
      %1801 = vst.msk [vmem:[%s218 + $0x64] sm:$0xf] %vm1775, %v1768
      %1802 = vst.msk [vmem:[%s218 + $0x68] sm:$0xf] %vm1775, %v1769
      %1803 = vst.msk [vmem:[%s218 + $0x6c] sm:$0xf] %vm1775, %v1770
      %1804 = vst.msk [vmem:[%s218 + $0x70] sm:$0xf] %vm1775, %v1771
      %1805 = vst.msk [vmem:[%s218 + $0x74] sm:$0xf] %vm1775, %v1772
      %1806 = vst.msk [vmem:[%s218 + $0x78] sm:$0xf] %vm1775, %v1773
      %1807 = vst.msk [vmem:[%s218 + $0x7c] sm:$0xf] %vm1775, %v1774
      %v1808 = vsel %vm1564, %v1664, 0.0
      %v1809 = vsel %vm1564, %v1666, 0.0
      %v1810 = vadd.f32 %v1808, %v1809
      %v1811 = vsel %vm1564, %v1669, 0.0
      %v1812 = vadd.f32 %v1810, %v1811
      %v1813 = vsel %vm1564, %v1671, 0.0
      %v1814 = vadd.f32 %v1812, %v1813
      %v1815 = vsel %vm1564, %v1674, 0.0
      %v1816 = vadd.f32 %v1814, %v1815
      %v1817 = vsel %vm1564, %v1676, 0.0
      %v1818 = vadd.f32 %v1816, %v1817
      %v1819 = vsel %vm1564, %v1679, 0.0
      %v1820 = vadd.f32 %v1818, %v1819
      %v1821 = vsel %vm1564, %v1681, 0.0
      %v1822 = vadd.f32 %v1820, %v1821
      %v1823 = vsel %vm1564, %v1684, 0.0
      %v1824 = vadd.f32 %v1822, %v1823
      %v1825 = vsel %vm1564, %v1686, 0.0
      %v1826 = vadd.f32 %v1824, %v1825
      %v1827 = vsel %vm1564, %v1689, 0.0
      %v1828 = vadd.f32 %v1826, %v1827
      %v1829 = vsel %vm1564, %v1691, 0.0
      %v1830 = vadd.f32 %v1828, %v1829
      %v1831 = vsel %vm1564, %v1694, 0.0
      %v1832 = vadd.f32 %v1830, %v1831
      %v1833 = vsel %vm1564, %v1696, 0.0
      %v1834 = vadd.f32 %v1832, %v1833
      %v1835 = vsel %vm1564, %v1699, 0.0
      %v1836 = vadd.f32 %v1834, %v1835
      %v1837 = vsel %vm1564, %v1701, 0.0
      %v1838 = vadd.f32 %v1836, %v1837
      %v1839 = vsel %vm1564, %v1704, 0.0
      %v1840 = vadd.f32 %v1838, %v1839
      %v1841 = vsel %vm1564, %v1706, 0.0
      %v1842 = vadd.f32 %v1840, %v1841
      %v1843 = vsel %vm1564, %v1709, 0.0
      %v1844 = vadd.f32 %v1842, %v1843
      %v1845 = vsel %vm1564, %v1711, 0.0
      %v1846 = vadd.f32 %v1844, %v1845
      %v1847 = vsel %vm1564, %v1714, 0.0
      %v1848 = vadd.f32 %v1846, %v1847
      %v1849 = vsel %vm1564, %v1716, 0.0
      %v1850 = vadd.f32 %v1848, %v1849
      %v1851 = vsel %vm1564, %v1719, 0.0
      %v1852 = vadd.f32 %v1850, %v1851
      %v1853 = vsel %vm1564, %v1721, 0.0
      %v1854 = vadd.f32 %v1852, %v1853
      %v1855 = vsel %vm1564, %v1724, 0.0
      %v1856 = vadd.f32 %v1854, %v1855
      %v1857 = vsel %vm1564, %v1726, 0.0
      %v1858 = vadd.f32 %v1856, %v1857
      %v1859 = vsel %vm1564, %v1729, 0.0
      %v1860 = vadd.f32 %v1858, %v1859
      %v1861 = vsel %vm1564, %v1731, 0.0
      %v1862 = vadd.f32 %v1860, %v1861
      %v1863 = vsel %vm1564, %v1734, 0.0
      %v1864 = vadd.f32 %v1862, %v1863
      %v1865 = vsel %vm1564, %v1736, 0.0
      %v1866 = vadd.f32 %v1864, %v1865
      %v1867 = vsel %vm1564, %v1739, 0.0
      %v1868 = vadd.f32 %v1866, %v1867
      %v1869 = vsel %vm1564, %v1741, 0.0
      %v1870 = vadd.f32 %v1868, %v1869
      %v1871 = vrot.slane %v1870, 4
      %v1872 = vadd.f32 %v1870, %v1871
      %v1873 = vrot.slane %v1872, 2
      %v1874 = vadd.f32 %v1872, %v1873
      %v1875 = vrot.slane %v1874, 1
      %v1876 = vadd.f32 %v1874, %v1875
      %vm1877 = vcmask 253952
      %1878 = vst.msk [vmem:[%s225] sm:$0x1] %vm1877, %v1876
      %v1879 = vmul.f32 %v1664, %v1664
      %v1880 = vmul.f32 %v1666, %v1666
      %v1881 = vmul.f32 %v1669, %v1669
      %v1882 = vmul.f32 %v1671, %v1671
      %v1883 = vmul.f32 %v1674, %v1674
      %v1884 = vmul.f32 %v1676, %v1676
      %v1885 = vmul.f32 %v1679, %v1679
      %v1886 = vmul.f32 %v1681, %v1681
      %v1887 = vmul.f32 %v1684, %v1684
      %v1888 = vmul.f32 %v1686, %v1686
      %v1889 = vmul.f32 %v1689, %v1689
      %v1890 = vmul.f32 %v1691, %v1691
      %v1891 = vmul.f32 %v1694, %v1694
      %v1892 = vmul.f32 %v1696, %v1696
      %v1893 = vmul.f32 %v1699, %v1699
      %v1894 = vmul.f32 %v1701, %v1701
      %v1895 = vmul.f32 %v1704, %v1704
      %v1896 = vmul.f32 %v1706, %v1706
      %v1897 = vmul.f32 %v1709, %v1709
      %v1898 = vmul.f32 %v1711, %v1711
      %v1899 = vmul.f32 %v1714, %v1714
      %v1900 = vmul.f32 %v1716, %v1716
      %v1901 = vmul.f32 %v1719, %v1719
      %v1902 = vmul.f32 %v1721, %v1721
      %v1903 = vmul.f32 %v1724, %v1724
      %v1904 = vmul.f32 %v1726, %v1726
      %v1905 = vmul.f32 %v1729, %v1729
      %v1906 = vmul.f32 %v1731, %v1731
      %v1907 = vmul.f32 %v1734, %v1734
      %v1908 = vmul.f32 %v1736, %v1736
      %v1909 = vmul.f32 %v1739, %v1739
      %v1910 = vmul.f32 %v1741, %v1741
      %v1911 = vsel %vm1564, %v1879, 0.0
      %v1912 = vsel %vm1564, %v1880, 0.0
      %v1913 = vadd.f32 %v1911, %v1912
      %v1914 = vsel %vm1564, %v1881, 0.0
      %v1915 = vadd.f32 %v1913, %v1914
      %v1916 = vsel %vm1564, %v1882, 0.0
      %v1917 = vadd.f32 %v1915, %v1916
      %v1918 = vsel %vm1564, %v1883, 0.0
      %v1919 = vadd.f32 %v1917, %v1918
      %v1920 = vsel %vm1564, %v1884, 0.0
      %v1921 = vadd.f32 %v1919, %v1920
      %v1922 = vsel %vm1564, %v1885, 0.0
      %v1923 = vadd.f32 %v1921, %v1922
      %v1924 = vsel %vm1564, %v1886, 0.0
      %v1925 = vadd.f32 %v1923, %v1924
      %v1926 = vsel %vm1564, %v1887, 0.0
      %v1927 = vadd.f32 %v1925, %v1926
      %v1928 = vsel %vm1564, %v1888, 0.0
      %v1929 = vadd.f32 %v1927, %v1928
      %v1930 = vsel %vm1564, %v1889, 0.0
      %v1931 = vadd.f32 %v1929, %v1930
      %v1932 = vsel %vm1564, %v1890, 0.0
      %v1933 = vadd.f32 %v1931, %v1932
      %v1934 = vsel %vm1564, %v1891, 0.0
      %v1935 = vadd.f32 %v1933, %v1934
      %v1936 = vsel %vm1564, %v1892, 0.0
      %v1937 = vadd.f32 %v1935, %v1936
      %v1938 = vsel %vm1564, %v1893, 0.0
      %v1939 = vadd.f32 %v1937, %v1938
      %v1940 = vsel %vm1564, %v1894, 0.0
      %v1941 = vadd.f32 %v1939, %v1940
      %v1942 = vsel %vm1564, %v1895, 0.0
      %v1943 = vadd.f32 %v1941, %v1942
      %v1944 = vsel %vm1564, %v1896, 0.0
      %v1945 = vadd.f32 %v1943, %v1944
      %v1946 = vsel %vm1564, %v1897, 0.0
      %v1947 = vadd.f32 %v1945, %v1946
      %v1948 = vsel %vm1564, %v1898, 0.0
      %v1949 = vadd.f32 %v1947, %v1948
      %v1950 = vsel %vm1564, %v1899, 0.0
      %v1951 = vadd.f32 %v1949, %v1950
      %v1952 = vsel %vm1564, %v1900, 0.0
      %v1953 = vadd.f32 %v1951, %v1952
      %v1954 = vsel %vm1564, %v1901, 0.0
      %v1955 = vadd.f32 %v1953, %v1954
      %v1956 = vsel %vm1564, %v1902, 0.0
      %v1957 = vadd.f32 %v1955, %v1956
      %v1958 = vsel %vm1564, %v1903, 0.0
      %v1959 = vadd.f32 %v1957, %v1958
      %v1960 = vsel %vm1564, %v1904, 0.0
      %v1961 = vadd.f32 %v1959, %v1960
      %v1962 = vsel %vm1564, %v1905, 0.0
      %v1963 = vadd.f32 %v1961, %v1962
      %v1964 = vsel %vm1564, %v1906, 0.0
      %v1965 = vadd.f32 %v1963, %v1964
      %v1966 = vsel %vm1564, %v1907, 0.0
      %v1967 = vadd.f32 %v1965, %v1966
      %v1968 = vsel %vm1564, %v1908, 0.0
      %v1969 = vadd.f32 %v1967, %v1968
      %v1970 = vsel %vm1564, %v1909, 0.0
      %v1971 = vadd.f32 %v1969, %v1970
      %v1972 = vsel %vm1564, %v1910, 0.0
      %v1973 = vadd.f32 %v1971, %v1972
      %v1974 = vrot.slane %v1973, 4
      %v1975 = vadd.f32 %v1973, %v1974
      %v1976 = vrot.slane %v1975, 2
      %v1977 = vadd.f32 %v1975, %v1976
      %v1978 = vrot.slane %v1977, 1
      %v1979 = vadd.f32 %v1977, %v1978
      %1980 = vst.msk [vmem:[%s225 + $0x1] sm:$0x1] %vm1877, %v1979
      %p1981 = scmp.lt.s32.totalorder %s19, 1
      %s1982 = scalar_select %p1981, %s19, 1
      %p1983 = scmp.lt.s32.totalorder %s20, 0
      %s1984 = scalar_select %p1983, %s20, 0
      %s1985 = smul.addr %s1984, 32
      %s1986 = smul.addr %s1982, 32
      %s1987 = sadd.s32 %s1985, %s1986
      %s1988 = smul.addr %s1987, 4
      %s1989 = scalar_lea.vmem %s2, %s1988
      %p1990 = scmp.lt.s32.totalorder %s19, 1
      %s1991 = scalar_select %p1990, %s19, 1
      %p1992 = scmp.lt.s32.totalorder %s20, 0
      %s1993 = scalar_select %p1992, %s20, 0
      %s1994 = sadd.s32 %s1993, %s1991
      %s1995 = smul.addr %s1994, 2
      %s1996 = scalar_lea.vmem %s3, %s1995
      // Predicated region
      $region29: #{up_conv_forward.2} parent=27 // pred_check
        %p1997 = pneg %p96
      $region30: #{up_conv_forward.2} parent=27 // pred_check_branch
        %1999 = sbr.rel (%p1997) target = $region32
      $region31: #{up_conv_forward.2} parent=27 // pred_region
        _
      $region32: #{up_conv_forward.2} parent=27 // pred_fallthru
        _
      // Predicated region
      $region33: #{up_conv_forward.2} parent=27 // pred_check
        %p2000 = pneg %p124
      $region34: #{up_conv_forward.2} parent=27 // pred_check_branch
        %2002 = sbr.rel (%p2000) target = $region36
      $region35: #{up_conv_forward.2} parent=27 // pred_region
        _
      $region36: #{up_conv_forward.2} parent=27 // pred_fallthru
        _
    $region28: #{up_conv_forward.2} parent=5 // pred_fallthru
      _
    %p2003 = scmp.le.s32.totalorder 2, %s10
    // Predicated region
    $region37: #{up_conv_forward.2} parent=5 // pred_check
      %p2004 = pneg %p2003
    $region38: #{up_conv_forward.2} parent=5 // pred_check_branch
      %2006 = sbr.rel (%p2004) target = $region40
    $region39: #{up_conv_forward.2} parent=5 // pred_region
      %s2007 = ssub.s32 %s10, 2
      // Predicated region
      $region41: #{up_conv_forward.2} parent=39 // pred_check
        %p2008 = pneg %p102
      $region42: #{up_conv_forward.2} parent=39 // pred_check_branch
        %2010 = sbr.rel (%p2008) target = $region44
      $region43: #{up_conv_forward.2} parent=39 // pred_region
        %p2011 = scmp.lt.s32.totalorder %s21, 1
        %s2012 = scalar_select %p2011, %s21, 1
        %p2013 = scmp.lt.s32.totalorder %s22, 0
        %s2014 = scalar_select %p2013, %s22, 0
        %s2015 = smul.addr %s2014, 32
        %s2016 = smul.addr %s2012, 32
        %s2017 = sadd.s32 %s2015, %s2016
        %s2018 = smul.addr %s2017, 4
        %s2019 = scalar_lea.vmem %s2, %s2018
      $region44: #{up_conv_forward.2} parent=39 // pred_fallthru
        _
      // Predicated region
      $region45: #{up_conv_forward.2} parent=39 // pred_check
        %p2020 = pneg %p130
      $region46: #{up_conv_forward.2} parent=39 // pred_check_branch
        %2022 = sbr.rel (%p2020) target = $region48
      $region47: #{up_conv_forward.2} parent=39 // pred_region
        %p2023 = scmp.lt.s32.totalorder %s21, 1
        %s2024 = scalar_select %p2023, %s21, 1
        %p2025 = scmp.lt.s32.totalorder %s22, 0
        %s2026 = scalar_select %p2025, %s22, 0
        %s2027 = sadd.s32 %s2026, %s2024
        %s2028 = smul.addr %s2027, 2
        %s2029 = scalar_lea.vmem %s3, %s2028
      $region48: #{up_conv_forward.2} parent=39 // pred_fallthru
        _
    $region40: #{up_conv_forward.2} parent=5 // pred_fallthru
      _
  $region6: #{up_conv_forward.2} parent=0 // loop_footer
    %s14 = sadd.s32 1, %s10
  $region7: #{up_conv_forward.2} parent=0 // loop_footer_branch
    %9 = sbr.rel target = $region3
  $region8: #{up_conv_forward.2} parent=0 // loop_exit
    _

</llo_original>
